<compile_context>
chip_gen: v7x
topology: tpu7x:2x2x1
jax: 0.10.0
libtpu: 0.0.40
codegen_flags: <defaults>
</compile_context>

<pallas_src>
import jax
import jax.numpy as jnp
from jax.experimental import pallas as pl
from jax.experimental.pallas import tpu as pltpu

T_ACT = 0.5
T_BOOST = 0.3
HIDDEN = 128      # fc1 width in both sub-modules
NPAD = 128        # lane-padded width for boost_levels / action_dim (in-VMEM only)
NEG = -1e30       # "minus infinity" for masking padded columns


def _recip(x):
    """~f32-exact 1/x: EUP vrcp seed (free slot) + two Newton-Raphson steps on the VPU."""
    r = pl.reciprocal(x, approx=True)
    r = r * (2.0 - x * r)
    r = r * (2.0 - x * r)
    return r


def _rml_kernel(state_ref, w1f_ref, w1ab_ref, w2b_ref, w2a_ref, consts_ref, out_ref):
    H = w2b_ref.shape[0]
    A = out_ref.shape[1]                        # real action_dim (narrow HBM output)

    state = state_ref[...]                      # (TILE_B, S)
    consts = consts_ref[...]                    # (6, NPAD)
    b1b = consts[0:1, :]                        # boost fc1 bias            (1, H)
    b1a = consts[1:2, :]                        # action fc1 bias           (1, H)
    b2b = consts[2:3, :]                        # boost fc2 bias / Tboost, padded cols = NEG
    b2a = consts[3:4, :]                        # action fc2 bias / Tact,  padded cols = NEG
    cost = consts[4:5, :]                       # cost, padded cols = 0
    padmask = consts[5:6, :]                    # 0 on real cols, 1 on padded cols

    # ---- fused state-side matmul: [state @ w1b | state @ w1a_state] ----
    pre = jnp.dot(state, w1f_ref[...], preferred_element_type=jnp.float32)  # (TILE_B, 2H)

    # ---- BoostModule: softmax(fc2(relu(fc1(state))) / Tboost)  (1/Tboost folded) ----
    h_b = jnp.maximum(pre[:, :H] + b1b, 0.0)
    lb = jnp.dot(h_b, w2b_ref[...], preferred_element_type=jnp.float32) + b2b
    lb = lb - jnp.max(lb, axis=1, keepdims=True)
    eb = jnp.exp(lb)                            # padded cols -> exp(~-1e30) == 0
    boost = eb * _recip(jnp.sum(eb, axis=1, keepdims=True))

    # ---- ActionSelectionModule (1/Tact folded into w2a/b2a) ----
    h_a = jnp.maximum(
        pre[:, H:]
        + jnp.dot(boost, w1ab_ref[...], preferred_element_type=jnp.float32)
        + b1a,
        0.0,
    )
    la = jnp.dot(h_a, w2a_ref[...], preferred_element_type=jnp.float32) + b2a
    # padded cols: boost==0, so divide by (boost + 1) there to avoid 0*inf NaNs;
    # their logits are already NEG so they vanish in the softmax.
    z = la - cost * _recip(boost + padmask)
    z = z - jnp.max(z, axis=1, keepdims=True)
    e = jnp.exp(z)
    inv = _recip(jnp.sum(e, axis=1, keepdims=True))
    # Store only the real action columns to HBM (narrow, masked vst; no padded writeback).
    out_ref[...] = (e[:, :A] * inv).astype(out_ref.dtype)


def _pick_tile_b(B, max_tile=1024):
    """Largest batch tile that still leaves >=2 grid steps (v7x two TCs / pipelining)."""
    if B <= 2 * max_tile:
        tile = B // 2
    else:
        tile = min(max_tile, B // 4)
    return max(8, (tile // 8) * 8)


def rml_forward(state, packed, action_dim, tile_b=None):
    """Full RML forward pass: batch-gridded Pallas kernel with narrow (B, action_dim) output."""
    B, S = state.shape
    if tile_b is None:
        tile_b = _pick_tile_b(B)
    grid = pl.cdiv(B, tile_b)
    b_pad = grid * tile_b
    if b_pad != B:   # pad batch with zero rows so any B works; sliced off below
        state = jnp.concatenate([state, jnp.zeros((b_pad - B, S), state.dtype)], axis=0)

    # Weights/constants: constant index_map -> DMA'd once, VMEM-resident across grid steps.
    resident = lambda arr: pl.BlockSpec(arr.shape, lambda i: (0, 0))

    out = pl.pallas_call(
        _rml_kernel,
        out_shape=jax.ShapeDtypeStruct((b_pad, action_dim), jnp.float32),
        grid=(grid,),
        in_specs=[
            pl.BlockSpec((tile_b, S), lambda i: (i, 0)),   # state: tiled over batch
            resident(packed["w1f"]),                       # fused fc1 weight (S, 2H)
            resident(packed["w1ab"]),                      # boost -> action fc1 (NPAD, H)
            resident(packed["w2b"]),                       # (H, NPAD), /Tboost folded
            resident(packed["w2a"]),                       # (H, NPAD), /Tact folded
            resident(packed["consts"]),                    # packed biases/cost/mask (6, NPAD)
        ],
        out_specs=pl.BlockSpec((tile_b, action_dim), lambda i: (i, 0)),
        compiler_params=pltpu.CompilerParams(dimension_semantics=("parallel",)),
    )(state, packed["w1f"], packed["w1ab"], packed["w2b"], packed["w2a"], packed["consts"])

    return out[:B] if b_pad != B else out


def init_params(key, state_dim, action_dim, boost_levels, hidden=HIDDEN):
    """Raw (unfolded, unpadded) params with torch.nn.Linear-style uniform init."""
    ks = jax.random.split(key, 9)

    def lin(kw, kb, fan_in, fan_out):
        bound = 1.0 / jnp.sqrt(jnp.float32(fan_in))
        w = jax.random.uniform(kw, (fan_in, fan_out), jnp.float32, -bound, bound)
        b = jax.random.uniform(kb, (1, fan_out), jnp.float32, -bound, bound)
        return w, b

    w1b, b1b = lin(ks[0], ks[1], state_dim, hidden)
    w2b, b2b = lin(ks[2], ks[3], hidden, boost_levels)
    w1a, b1a = lin(ks[4], ks[5], state_dim + boost_levels, hidden)
    w2a, b2a = lin(ks[6], ks[7], hidden, action_dim)
    cost = jax.random.normal(ks[8], (1, action_dim), jnp.float32)
    return {
        "w1b": w1b, "b1b": b1b, "w2b": w2b, "b2b": b2b,
        "w1a": w1a, "b1a": b1a, "w2a": w2a, "b2a": b2a, "cost": cost,
    }


def pack_params(p, state_dim, action_dim, boost_levels, hidden=HIDDEN, npad=NPAD):
    """One-time constant transform: fuse, fold temperatures, lane-pad to 128."""
    assert hidden == npad, "bias packing assumes fc1 width == padded lane width"
    # fused state-side fc1 weight: [w1b | w1a[:state_dim]] -> (S, 2H)
    w1f = jnp.concatenate([p["w1b"], p["w1a"][:state_dim]], axis=1)
    # boost-side half of action fc1, zero-padded rows to NPAD
    w1ab = jnp.zeros((npad, hidden), jnp.float32).at[:boost_levels].set(p["w1a"][state_dim:])
    # fc2 weights with temperature folded in, zero-padded lanes to NPAD
    w2b_p = jnp.zeros((hidden, npad), jnp.float32).at[:, :boost_levels].set(p["w2b"] / T_BOOST)
    w2a_p = jnp.zeros((hidden, npad), jnp.float32).at[:, :action_dim].set(p["w2a"] / T_ACT)
    # packed (6, NPAD) constants: b1b, b1a, b2b/T, b2a/T, cost, pad-mask
    b2b_row = jnp.full((npad,), NEG, jnp.float32).at[:boost_levels].set(p["b2b"][0] / T_BOOST)
    b2a_row = jnp.full((npad,), NEG, jnp.float32).at[:action_dim].set(p["b2a"][0] / T_ACT)
    cost_row = jnp.zeros((npad,), jnp.float32).at[:action_dim].set(p["cost"][0])
    padmask = jnp.zeros((npad,), jnp.float32).at[boost_levels:].set(1.0)
    consts = jnp.stack([p["b1b"][0], p["b1a"][0], b2b_row, b2a_row, cost_row, padmask])
    return {"w1f": w1f, "w1ab": w1ab, "w2b": w2b_p, "w2a": w2a_p, "consts": consts}


def rml_reference(state, p):
    """Pure-JAX reference (unfused, unfolded) for correctness checking."""
    h = jnp.maximum(state @ p["w1b"] + p["b1b"], 0.0)
    boost = jax.nn.softmax((h @ p["w2b"] + p["b2b"]) / T_BOOST, axis=1)
    x = jnp.concatenate([state, boost], axis=1)
    h2 = jnp.maximum(x @ p["w1a"] + p["b1a"], 0.0)
    logits = h2 @ p["w2a"] + p["b2a"]
    return jax.nn.softmax(logits / T_ACT - p["cost"] / boost, axis=1)


if __name__ == "__main__":
    state_dim = 10
    action_dim = 4       # == boost_levels so cost / boost_probs broadcasts (see note above)
    boost_levels = 4

    key = jax.random.PRNGKey(0)
    kp, kx = jax.random.split(key)
    raw = init_params(kp, state_dim, action_dim, boost_levels)
    packed = pack_params(raw, state_dim, action_dim, boost_levels)

    # batch=512 -> tile_b=256, grid=2 (exercises the batch pipeline / both v7x TCs);
    # batch=20  -> non-multiple batch, exercises the zero-pad + row-slice path.
    for batch in (512, 20):
        state = jax.random.normal(jax.random.fold_in(kx, batch), (batch, state_dim), jnp.float32)
        out = jax.block_until_ready(rml_forward(state, packed, action_dim))
        ref = rml_reference(state, raw)
        assert out.shape == (batch, action_dim)
        assert jnp.allclose(out, ref, atol=5e-5, rtol=5e-5), f"mismatch vs reference (batch={batch})"
        assert jnp.allclose(jnp.sum(out, axis=1), 1.0, atol=1e-5), "softmax rows must sum to 1"

    print("KERNEL_OK")
</pallas_src>

<mosaic_0001>
module attributes {stable_mosaic.version = 11 : i64} {
  func.func @_rml_kernel(%arg0: i32, %arg1: memref<256x10xf32, #tpu.memory_space<vmem>>, %arg2: memref<10x256xf32, #tpu.memory_space<vmem>>, %arg3: memref<128x128xf32, #tpu.memory_space<vmem>>, %arg4: memref<128x128xf32, #tpu.memory_space<vmem>>, %arg5: memref<128x128xf32, #tpu.memory_space<vmem>>, %arg6: memref<6x128xf32, #tpu.memory_space<vmem>>, %arg7: memref<256x4xf32, #tpu.memory_space<vmem>>) attributes {dimension_semantics = [#tpu.dimension_semantics<parallel>], iteration_bounds = array<i64: 2>, scalar_prefetch = 0 : i64, scratch_operands = 0 : i64, tpu.core_type = #tpu.core_type<tc>, window_params = [{transform_indices = @transform_0, window_bounds = array<i64: 256, 10>}, {pipeline_mode = #tpu.pipeline_mode<synchronous>, transform_indices = @transform_1, window_bounds = array<i64: 10, 256>}, {pipeline_mode = #tpu.pipeline_mode<synchronous>, transform_indices = @transform_2, window_bounds = array<i64: 128, 128>}, {pipeline_mode = #tpu.pipeline_mode<synchronous>, transform_indices = @transform_3, window_bounds = array<i64: 128, 128>}, {pipeline_mode = #tpu.pipeline_mode<synchronous>, transform_indices = @transform_4, window_bounds = array<i64: 128, 128>}, {pipeline_mode = #tpu.pipeline_mode<synchronous>, transform_indices = @transform_5, window_bounds = array<i64: 6, 128>}, {transform_indices = @transform_6, window_bounds = array<i64: 256, 4>}]} {
    %c0 = arith.constant 0 : index
    %c0_0 = arith.constant 0 : index
    %0 = vector.load %arg1[%c0, %c0_0] : memref<256x10xf32, #tpu.memory_space<vmem>>, vector<256x10xf32>
    %c0_1 = arith.constant 0 : index
    %c0_2 = arith.constant 0 : index
    %1 = vector.load %arg6[%c0_1, %c0_2] : memref<6x128xf32, #tpu.memory_space<vmem>>, vector<6x128xf32>
    %2 = vector.extract_strided_slice %1 {offsets = [0, 0], sizes = [1, 128], strides = [1, 1]} : vector<6x128xf32> to vector<1x128xf32>
    %3 = vector.extract_strided_slice %1 {offsets = [1, 0], sizes = [1, 128], strides = [1, 1]} : vector<6x128xf32> to vector<1x128xf32>
    %4 = vector.extract_strided_slice %1 {offsets = [2, 0], sizes = [1, 128], strides = [1, 1]} : vector<6x128xf32> to vector<1x128xf32>
    %5 = vector.extract_strided_slice %1 {offsets = [3, 0], sizes = [1, 128], strides = [1, 1]} : vector<6x128xf32> to vector<1x128xf32>
    %6 = vector.extract_strided_slice %1 {offsets = [4, 0], sizes = [1, 128], strides = [1, 1]} : vector<6x128xf32> to vector<1x128xf32>
    %7 = vector.extract_strided_slice %1 {offsets = [5, 0], sizes = [1, 128], strides = [1, 1]} : vector<6x128xf32> to vector<1x128xf32>
    %c0_3 = arith.constant 0 : index
    %c0_4 = arith.constant 0 : index
    %8 = vector.load %arg2[%c0_3, %c0_4] : memref<10x256xf32, #tpu.memory_space<vmem>>, vector<10x256xf32>
    %cst = arith.constant dense<0.000000e+00> : vector<256x256xf32>
    %9 = tpu.matmul %0, %8, %cst {dimension_numbers = #tpu.dot_dimension_numbers<[1], [0], [0], [1], [0, 0, 1, 1], [], []>} : vector<256x10xf32>, vector<10x256xf32>, vector<256x256xf32> -> vector<256x256xf32>
    %10 = vector.extract_strided_slice %9 {offsets = [0, 0], sizes = [256, 128], strides = [1, 1]} : vector<256x256xf32> to vector<256x128xf32>
    %11 = vector.broadcast %2 : vector<1x128xf32> to vector<256x128xf32>
    %12 = arith.addf %10, %11 : vector<256x128xf32>
    %cst_5 = arith.constant 0.000000e+00 : f32
    %13 = vector.broadcast %cst_5 : f32 to vector<256x128xf32>
    %14 = arith.maximumf %12, %13 : vector<256x128xf32>
    %c0_6 = arith.constant 0 : index
    %c0_7 = arith.constant 0 : index
    %15 = vector.load %arg4[%c0_6, %c0_7] : memref<128x128xf32, #tpu.memory_space<vmem>>, vector<128x128xf32>
    %cst_8 = arith.constant dense<0.000000e+00> : vector<256x128xf32>
    %16 = tpu.matmul %14, %15, %cst_8 {dimension_numbers = #tpu.dot_dimension_numbers<[1], [0], [0], [1], [0, 0, 1, 1], [], []>} : vector<256x128xf32>, vector<128x128xf32>, vector<256x128xf32> -> vector<256x128xf32>
    %17 = vector.broadcast %4 : vector<1x128xf32> to vector<256x128xf32>
    %18 = arith.addf %16, %17 : vector<256x128xf32>
    %cst_9 = arith.constant dense<0xFF800000> : vector<256xf32>
    %19 = vector.multi_reduction <maximumf>, %18, %cst_9 [1] : vector<256x128xf32> to vector<256xf32>
    %20 = vector.shape_cast %19 : vector<256xf32> to vector<256x1xf32>
    %21 = vector.broadcast %20 : vector<256x1xf32> to vector<256x128xf32>
    %22 = arith.subf %18, %21 : vector<256x128xf32>
    %23 = math.exp %22 : vector<256x128xf32>
    %cst_10 = arith.constant dense<0.000000e+00> : vector<256xf32>
    %24 = vector.multi_reduction <add>, %23, %cst_10 [1] : vector<256x128xf32> to vector<256xf32>
    %25 = vector.shape_cast %24 : vector<256xf32> to vector<256x1xf32>
    %26 = tpu.reciprocal %25 {approx = true} : vector<256x1xf32> -> vector<256x1xf32>
    %27 = arith.mulf %25, %26 : vector<256x1xf32>
    %cst_11 = arith.constant 2.000000e+00 : f32
    %28 = vector.broadcast %cst_11 : f32 to vector<256x1xf32>
    %29 = arith.subf %28, %27 : vector<256x1xf32>
    %30 = arith.mulf %26, %29 : vector<256x1xf32>
    %31 = arith.mulf %25, %30 : vector<256x1xf32>
    %cst_12 = arith.constant 2.000000e+00 : f32
    %32 = vector.broadcast %cst_12 : f32 to vector<256x1xf32>
    %33 = arith.subf %32, %31 : vector<256x1xf32>
    %34 = arith.mulf %30, %33 : vector<256x1xf32>
    %35 = vector.broadcast %34 : vector<256x1xf32> to vector<256x128xf32>
    %36 = arith.mulf %23, %35 : vector<256x128xf32>
    %37 = vector.extract_strided_slice %9 {offsets = [0, 128], sizes = [256, 128], strides = [1, 1]} : vector<256x256xf32> to vector<256x128xf32>
    %c0_13 = arith.constant 0 : index
    %c0_14 = arith.constant 0 : index
    %38 = vector.load %arg3[%c0_13, %c0_14] : memref<128x128xf32, #tpu.memory_space<vmem>>, vector<128x128xf32>
    %cst_15 = arith.constant dense<0.000000e+00> : vector<256x128xf32>
    %39 = tpu.matmul %36, %38, %cst_15 {dimension_numbers = #tpu.dot_dimension_numbers<[1], [0], [0], [1], [0, 0, 1, 1], [], []>} : vector<256x128xf32>, vector<128x128xf32>, vector<256x128xf32> -> vector<256x128xf32>
    %40 = arith.addf %37, %39 : vector<256x128xf32>
    %41 = vector.broadcast %3 : vector<1x128xf32> to vector<256x128xf32>
    %42 = arith.addf %40, %41 : vector<256x128xf32>
    %cst_16 = arith.constant 0.000000e+00 : f32
    %43 = vector.broadcast %cst_16 : f32 to vector<256x128xf32>
    %44 = arith.maximumf %42, %43 : vector<256x128xf32>
    %c0_17 = arith.constant 0 : index
    %c0_18 = arith.constant 0 : index
    %45 = vector.load %arg5[%c0_17, %c0_18] : memref<128x128xf32, #tpu.memory_space<vmem>>, vector<128x128xf32>
    %cst_19 = arith.constant dense<0.000000e+00> : vector<256x128xf32>
    %46 = tpu.matmul %44, %45, %cst_19 {dimension_numbers = #tpu.dot_dimension_numbers<[1], [0], [0], [1], [0, 0, 1, 1], [], []>} : vector<256x128xf32>, vector<128x128xf32>, vector<256x128xf32> -> vector<256x128xf32>
    %47 = vector.broadcast %5 : vector<1x128xf32> to vector<256x128xf32>
    %48 = arith.addf %46, %47 : vector<256x128xf32>
    %49 = vector.broadcast %7 : vector<1x128xf32> to vector<256x128xf32>
    %50 = arith.addf %36, %49 : vector<256x128xf32>
    %51 = tpu.reciprocal %50 {approx = true} : vector<256x128xf32> -> vector<256x128xf32>
    %52 = arith.mulf %50, %51 : vector<256x128xf32>
    %cst_20 = arith.constant 2.000000e+00 : f32
    %53 = vector.broadcast %cst_20 : f32 to vector<256x128xf32>
    %54 = arith.subf %53, %52 : vector<256x128xf32>
    %55 = arith.mulf %51, %54 : vector<256x128xf32>
    %56 = arith.mulf %50, %55 : vector<256x128xf32>
    %cst_21 = arith.constant 2.000000e+00 : f32
    %57 = vector.broadcast %cst_21 : f32 to vector<256x128xf32>
    %58 = arith.subf %57, %56 : vector<256x128xf32>
    %59 = arith.mulf %55, %58 : vector<256x128xf32>
    %60 = vector.broadcast %6 : vector<1x128xf32> to vector<256x128xf32>
    %61 = arith.mulf %60, %59 : vector<256x128xf32>
    %62 = arith.subf %48, %61 : vector<256x128xf32>
    %cst_22 = arith.constant dense<0xFF800000> : vector<256xf32>
    %63 = vector.multi_reduction <maximumf>, %62, %cst_22 [1] : vector<256x128xf32> to vector<256xf32>
    %64 = vector.shape_cast %63 : vector<256xf32> to vector<256x1xf32>
    %65 = vector.broadcast %64 : vector<256x1xf32> to vector<256x128xf32>
    %66 = arith.subf %62, %65 : vector<256x128xf32>
    %67 = math.exp %66 : vector<256x128xf32>
    %cst_23 = arith.constant dense<0.000000e+00> : vector<256xf32>
    %68 = vector.multi_reduction <add>, %67, %cst_23 [1] : vector<256x128xf32> to vector<256xf32>
    %69 = vector.shape_cast %68 : vector<256xf32> to vector<256x1xf32>
    %70 = tpu.reciprocal %69 {approx = true} : vector<256x1xf32> -> vector<256x1xf32>
    %71 = arith.mulf %69, %70 : vector<256x1xf32>
    %cst_24 = arith.constant 2.000000e+00 : f32
    %72 = vector.broadcast %cst_24 : f32 to vector<256x1xf32>
    %73 = arith.subf %72, %71 : vector<256x1xf32>
    %74 = arith.mulf %70, %73 : vector<256x1xf32>
    %75 = arith.mulf %69, %74 : vector<256x1xf32>
    %cst_25 = arith.constant 2.000000e+00 : f32
    %76 = vector.broadcast %cst_25 : f32 to vector<256x1xf32>
    %77 = arith.subf %76, %75 : vector<256x1xf32>
    %78 = arith.mulf %74, %77 : vector<256x1xf32>
    %79 = vector.extract_strided_slice %67 {offsets = [0, 0], sizes = [256, 4], strides = [1, 1]} : vector<256x128xf32> to vector<256x4xf32>
    %80 = vector.broadcast %78 : vector<256x1xf32> to vector<256x4xf32>
    %81 = arith.mulf %79, %80 : vector<256x4xf32>
    %c0_26 = arith.constant 0 : index
    %c0_27 = arith.constant 0 : index
    %82 = vector.load %arg7[%c0_26, %c0_27] : memref<256x4xf32, #tpu.memory_space<vmem>>, vector<256x4xf32>
    tpu.vector_store %arg7[%c0_26, %c0_27], %81 {strides = array<i32>} : memref<256x4xf32, #tpu.memory_space<vmem>>, vector<256x4xf32>,
    return
  }
  func.func @transform_0(%arg0: i32) -> (i32, i32) {
    %c0_i32 = arith.constant 0 : i32
    %c0_i32_0 = arith.constant 0 : i32
    return %arg0, %c0_i32 : i32, i32
  }
  func.func @transform_1(%arg0: i32) -> (i32, i32) {
    %c0_i32 = arith.constant 0 : i32
    %c0_i32_0 = arith.constant 0 : i32
    %c0_i32_1 = arith.constant 0 : i32
    return %c0_i32, %c0_i32_0 : i32, i32
  }
  func.func @transform_2(%arg0: i32) -> (i32, i32) {
    %c0_i32 = arith.constant 0 : i32
    %c0_i32_0 = arith.constant 0 : i32
    %c0_i32_1 = arith.constant 0 : i32
    return %c0_i32, %c0_i32_0 : i32, i32
  }
  func.func @transform_3(%arg0: i32) -> (i32, i32) {
    %c0_i32 = arith.constant 0 : i32
    %c0_i32_0 = arith.constant 0 : i32
    %c0_i32_1 = arith.constant 0 : i32
    return %c0_i32, %c0_i32_0 : i32, i32
  }
  func.func @transform_4(%arg0: i32) -> (i32, i32) {
    %c0_i32 = arith.constant 0 : i32
    %c0_i32_0 = arith.constant 0 : i32
    %c0_i32_1 = arith.constant 0 : i32
    return %c0_i32, %c0_i32_0 : i32, i32
  }
  func.func @transform_5(%arg0: i32) -> (i32, i32) {
    %c0_i32 = arith.constant 0 : i32
    %c0_i32_0 = arith.constant 0 : i32
    %c0_i32_1 = arith.constant 0 : i32
    return %c0_i32, %c0_i32_0 : i32, i32
  }
  func.func @transform_6(%arg0: i32) -> (i32, i32) {
    %c0_i32 = arith.constant 0 : i32
    %c0_i32_0 = arith.constant 0 : i32
    return %arg0, %c0_i32 : i32, i32
  }
}

</mosaic_0001>

<llo_original>
// kernel: tpu_custom_call.1
$region0: #{tpu_custom_call.1}
  #allocation0 [shape = 'u32[]', space=smem, size = 0x4, offset = 0x4, fixed_abs, tag = 'smem constant byte address 0x4 - core index']
  #allocation1 [shape = 'u32[144,128]{1,0:T(1,128)}', space=vmem, size = 0x12000, scoped, tag = 'internal scratch']
  %s0 = inlined_call_operand.vmem [shape: f32[512,10], index: 0, kind: input, shape index: {}]
  %s1 = inlined_call_operand.vmem [shape: f32[10,256], index: 1, kind: input, shape index: {}]
  %s2 = inlined_call_operand.vmem [shape: f32[128,128], index: 2, kind: input, shape index: {}]
  %s3 = inlined_call_operand.vmem [shape: f32[128,128], index: 3, kind: input, shape index: {}]
  %s4 = inlined_call_operand.vmem [shape: f32[128,128], index: 4, kind: input, shape index: {}]
  %s5 = inlined_call_operand.vmem [shape: f32[6,128], index: 5, kind: input, shape index: {}]
  %s6 = inlined_call_operand.vmem [shape: f32[512,4], index: 6, kind: output, shape index: {}]
  %s7 = sld [smem:[#allocation0]]
  $region57: #{tpu_custom_call.1} parent=0
    _
  %s9 = ssub.s32 1, %s7
  %s10 = scalar_select 0, %s9, %s7
  loop: start=0, step=1, limit=4
  $region2: #{tpu_custom_call.1} parent=0 // loop_pre_header
    _
  $region3: #{tpu_custom_call.1} parent=0 // loop_header
    %s12 = sphi 0, %s16
    %p13 = scmp.ge.s32.totalorder %s12, 4
    %s22 = sphi 0, %s24
    %s25 = sphi 0, %s22
    %s26 = sphi 0, %s25
    %s42 = sphi 0, %s26
    %s46 = sphi 0, %s46
    %s48 = sphi 0, %s46
    %s49 = sphi 0, %s48
    %s63 = sphi 0, %s49
    %s67 = sphi 0, %s67
    %s69 = sphi 0, %s67
    %s70 = sphi 0, %s69
    %s84 = sphi 0, %s70
    %s88 = sphi 0, %s88
    %s90 = sphi 0, %s88
    %s91 = sphi 0, %s90
    %s105 = sphi 0, %s91
    %s109 = sphi 0, %s109
    %s111 = sphi 0, %s109
    %s112 = sphi 0, %s111
    %s126 = sphi 0, %s112
    %s130 = sphi 0, %s130
    %s132 = sphi 0, %s130
    %s133 = sphi 0, %s132
    %s147 = sphi 0, %s133
    %s153 = sphi 0, %s155
    %s156 = sphi 0, %s153
    %s157 = sphi 0, %s156
    %s173 = sphi 0, %s157
  $region4: #{tpu_custom_call.1} parent=0 // loop_header_branch
    %15 = sbr.rel (%p13) target = $region8
  $region5: #{tpu_custom_call.1} parent=0 // loop_body
    %s17 = ssub.s32 %s12, 1
    %s18 = ssub.s32 %s12, 2
    %s19 = sadd.s32 %s12, 1
    %s20 = ssub.s32 %s12, %s19
    %p21 = scmp.eq.s32.totalorder %s20, 0
    %s23 = sadd.s32 %s22, 1
    %s24 = scalar_select %p21, %s22, %s23
    %p27 = pneg %p21
    %p28 = scmp.eq.s32.totalorder %s12, 1
    %p29 = por %p27, %p28
    %p30 = scmp.ne.s32.totalorder %s22, %s25
    %p31 = scmp.eq.s32.totalorder %s12, 0
    %p32 = por %p30, %p31
    %p33 = scmp.ne.s32.totalorder %s22, %s25
    %p34 = scmp.eq.s32.totalorder %s17, 1
    %p35 = por %p33, %p34
    %p36 = scmp.ne.s32.totalorder %s25, %s26
    %p37 = scmp.eq.s32.totalorder %s17, 0
    %p38 = por %p36, %p37
    %p39 = scmp.ne.s32.totalorder %s25, %s26
    %p40 = scmp.eq.s32.totalorder %s18, 1
    %p41 = por %p39, %p40
    %p43 = scmp.ne.s32.totalorder %s26, %s42
    %p44 = scmp.eq.s32.totalorder %s18, 0
    %p45 = por %p43, %p44
    %s47 = sadd.s32 %s46, 1
    %p50 = scmp.eq.s32.totalorder %s12, 1
    %p51 = scmp.ne.s32.totalorder %s46, %s48
    %p52 = scmp.eq.s32.totalorder %s12, 0
    %p53 = por %p51, %p52
    %p54 = scmp.ne.s32.totalorder %s46, %s48
    %p55 = scmp.eq.s32.totalorder %s17, 1
    %p56 = por %p54, %p55
    %p57 = scmp.ne.s32.totalorder %s48, %s49
    %p58 = scmp.eq.s32.totalorder %s17, 0
    %p59 = por %p57, %p58
    %p60 = scmp.ne.s32.totalorder %s48, %s49
    %p61 = scmp.eq.s32.totalorder %s18, 1
    %p62 = por %p60, %p61
    %p64 = scmp.ne.s32.totalorder %s49, %s63
    %p65 = scmp.eq.s32.totalorder %s18, 0
    %p66 = por %p64, %p65
    %s68 = sadd.s32 %s67, 1
    %p71 = scmp.eq.s32.totalorder %s12, 1
    %p72 = scmp.ne.s32.totalorder %s67, %s69
    %p73 = scmp.eq.s32.totalorder %s12, 0
    %p74 = por %p72, %p73
    %p75 = scmp.ne.s32.totalorder %s67, %s69
    %p76 = scmp.eq.s32.totalorder %s17, 1
    %p77 = por %p75, %p76
    %p78 = scmp.ne.s32.totalorder %s69, %s70
    %p79 = scmp.eq.s32.totalorder %s17, 0
    %p80 = por %p78, %p79
    %p81 = scmp.ne.s32.totalorder %s69, %s70
    %p82 = scmp.eq.s32.totalorder %s18, 1
    %p83 = por %p81, %p82
    %p85 = scmp.ne.s32.totalorder %s70, %s84
    %p86 = scmp.eq.s32.totalorder %s18, 0
    %p87 = por %p85, %p86
    %s89 = sadd.s32 %s88, 1
    %p92 = scmp.eq.s32.totalorder %s12, 1
    %p93 = scmp.ne.s32.totalorder %s88, %s90
    %p94 = scmp.eq.s32.totalorder %s12, 0
    %p95 = por %p93, %p94
    %p96 = scmp.ne.s32.totalorder %s88, %s90
    %p97 = scmp.eq.s32.totalorder %s17, 1
    %p98 = por %p96, %p97
    %p99 = scmp.ne.s32.totalorder %s90, %s91
    %p100 = scmp.eq.s32.totalorder %s17, 0
    %p101 = por %p99, %p100
    %p102 = scmp.ne.s32.totalorder %s90, %s91
    %p103 = scmp.eq.s32.totalorder %s18, 1
    %p104 = por %p102, %p103
    %p106 = scmp.ne.s32.totalorder %s91, %s105
    %p107 = scmp.eq.s32.totalorder %s18, 0
    %p108 = por %p106, %p107
    %s110 = sadd.s32 %s109, 1
    %p113 = scmp.eq.s32.totalorder %s12, 1
    %p114 = scmp.ne.s32.totalorder %s109, %s111
    %p115 = scmp.eq.s32.totalorder %s12, 0
    %p116 = por %p114, %p115
    %p117 = scmp.ne.s32.totalorder %s109, %s111
    %p118 = scmp.eq.s32.totalorder %s17, 1
    %p119 = por %p117, %p118
    %p120 = scmp.ne.s32.totalorder %s111, %s112
    %p121 = scmp.eq.s32.totalorder %s17, 0
    %p122 = por %p120, %p121
    %p123 = scmp.ne.s32.totalorder %s111, %s112
    %p124 = scmp.eq.s32.totalorder %s18, 1
    %p125 = por %p123, %p124
    %p127 = scmp.ne.s32.totalorder %s112, %s126
    %p128 = scmp.eq.s32.totalorder %s18, 0
    %p129 = por %p127, %p128
    %s131 = sadd.s32 %s130, 1
    %p134 = scmp.eq.s32.totalorder %s12, 1
    %p135 = scmp.ne.s32.totalorder %s130, %s132
    %p136 = scmp.eq.s32.totalorder %s12, 0
    %p137 = por %p135, %p136
    %p138 = scmp.ne.s32.totalorder %s130, %s132
    %p139 = scmp.eq.s32.totalorder %s17, 1
    %p140 = por %p138, %p139
    %p141 = scmp.ne.s32.totalorder %s132, %s133
    %p142 = scmp.eq.s32.totalorder %s17, 0
    %p143 = por %p141, %p142
    %p144 = scmp.ne.s32.totalorder %s132, %s133
    %p145 = scmp.eq.s32.totalorder %s18, 1
    %p146 = por %p144, %p145
    %p148 = scmp.ne.s32.totalorder %s133, %s147
    %p149 = scmp.eq.s32.totalorder %s18, 0
    %p150 = por %p148, %p149
    %s151 = ssub.s32 %s12, %s19
    %p152 = scmp.eq.s32.totalorder %s151, 0
    %s154 = sadd.s32 %s153, 1
    %s155 = scalar_select %p152, %s153, %s154
    %p158 = pneg %p152
    %p159 = scmp.eq.s32.totalorder %s12, 1
    %p160 = por %p158, %p159
    %p161 = scmp.ne.s32.totalorder %s153, %s156
    %p162 = scmp.eq.s32.totalorder %s12, 0
    %p163 = por %p161, %p162
    %p164 = scmp.ne.s32.totalorder %s153, %s156
    %p165 = scmp.eq.s32.totalorder %s17, 1
    %p166 = por %p164, %p165
    %p167 = scmp.ne.s32.totalorder %s156, %s157
    %p168 = scmp.eq.s32.totalorder %s17, 0
    %p169 = por %p167, %p168
    %p170 = scmp.ne.s32.totalorder %s156, %s157
    %p171 = scmp.eq.s32.totalorder %s18, 1
    %p172 = por %p170, %p171
    %p174 = scmp.ne.s32.totalorder %s157, %s173
    %p175 = scmp.eq.s32.totalorder %s18, 0
    %p176 = por %p174, %p175
    %p177 = scmp.le.s32.totalorder 1, %s12
    %p178 = scmp.lt.s32.totalorder %s12, 3
    %p179 = pnand %p177, %p178
    %p180 = pneg %p179
    // Predicated region
    $region9: #{tpu_custom_call.1} parent=5 // pred_check
      _
    $region10: #{tpu_custom_call.1} parent=5 // pred_check_branch
      %182 = sbr.rel (%p179) target = $region12
    $region11: #{tpu_custom_call.1} parent=5 // pred_region
      %s183 = ssub.s32 %s12, 1
      // Predicated region
      $region13: #{tpu_custom_call.1} parent=11 // pred_check
        %p184 = pneg %p59
      $region14: #{tpu_custom_call.1} parent=11 // pred_check_branch
        %186 = sbr.rel (%p184) target = $region16
      $region15: #{tpu_custom_call.1} parent=11 // pred_region
        _
      $region16: #{tpu_custom_call.1} parent=11 // pred_fallthru
        _
      // Predicated region
      $region17: #{tpu_custom_call.1} parent=11 // pred_check
        %p187 = pneg %p80
      $region18: #{tpu_custom_call.1} parent=11 // pred_check_branch
        %189 = sbr.rel (%p187) target = $region20
      $region19: #{tpu_custom_call.1} parent=11 // pred_region
        _
      $region20: #{tpu_custom_call.1} parent=11 // pred_fallthru
        _
      // Predicated region
      $region21: #{tpu_custom_call.1} parent=11 // pred_check
        %p190 = pneg %p101
      $region22: #{tpu_custom_call.1} parent=11 // pred_check_branch
        %192 = sbr.rel (%p190) target = $region24
      $region23: #{tpu_custom_call.1} parent=11 // pred_region
        _
      $region24: #{tpu_custom_call.1} parent=11 // pred_fallthru
        _
      // Predicated region
      $region25: #{tpu_custom_call.1} parent=11 // pred_check
        %p193 = pneg %p122
      $region26: #{tpu_custom_call.1} parent=11 // pred_check_branch
        %195 = sbr.rel (%p193) target = $region28
      $region27: #{tpu_custom_call.1} parent=11 // pred_region
        _
      $region28: #{tpu_custom_call.1} parent=11 // pred_fallthru
        _
      // Predicated region
      $region29: #{tpu_custom_call.1} parent=11 // pred_check
        %p196 = pneg %p143
      $region30: #{tpu_custom_call.1} parent=11 // pred_check_branch
        %198 = sbr.rel (%p196) target = $region32
      $region31: #{tpu_custom_call.1} parent=11 // pred_region
        _
      $region32: #{tpu_custom_call.1} parent=11 // pred_fallthru
        _
    $region12: #{tpu_custom_call.1} parent=5 // pred_fallthru
      _
    %p199 = scmp.lt.s32.totalorder %s12, 2
    // Predicated region
    $region33: #{tpu_custom_call.1} parent=5 // pred_check
      %p200 = pneg %p199
    $region34: #{tpu_custom_call.1} parent=5 // pred_check_branch
      %202 = sbr.rel (%p200) target = $region36
    $region35: #{tpu_custom_call.1} parent=5 // pred_region
      // Predicated region
      $region37: #{tpu_custom_call.1} parent=35 // pred_check
        %p203 = pneg %p32
      $region38: #{tpu_custom_call.1} parent=35 // pred_check_branch
        %205 = sbr.rel (%p203) target = $region40
      $region39: #{tpu_custom_call.1} parent=35 // pred_region
        %s206 = smul.u32 32, %s12
        %p207 = scmp.lt.s32.totalorder %s206, 63
        %s208 = scalar_select %p207, %s206, 63
        %s209 = smul.addr %s208, 8
        %s210 = scalar_lea.vmem %s0, %s209
        %s211 = smul.u32 32, %s12
      $region40: #{tpu_custom_call.1} parent=35 // pred_fallthru
        _
    $region36: #{tpu_custom_call.1} parent=5 // pred_fallthru
      _
    %p212 = scmp.le.s32.totalorder 1, %s12
    %p213 = scmp.lt.s32.totalorder %s12, 3
    %p214 = pnand %p212, %p213
    %p215 = pneg %p214
    // Predicated region
    $region41: #{tpu_custom_call.1} parent=5 // pred_check
      _
    $region42: #{tpu_custom_call.1} parent=5 // pred_check_branch
      %217 = sbr.rel (%p214) target = $region44
    $region43: #{tpu_custom_call.1} parent=5 // pred_region
      %s218 = ssub.s32 %s12, 1
      %s219 = smul.u32 32, %s17
      %p220 = scmp.lt.s32.totalorder %s219, 63
      %s221 = scalar_select %p220, %s219, 63
      %s222 = smul.addr %s221, 8
      %s223 = scalar_lea.vmem %s0, %s222
      %p224 = pneg %p38
      %p225 = pneg %p35
      %p226 = pneg %p59
      %p227 = pneg %p56
      %p228 = pneg %p80
      %p229 = pneg %p77
      %p230 = pneg %p101
      %p231 = pneg %p98
      %p232 = pneg %p122
      %p233 = pneg %p119
      %p234 = pneg %p143
      %p235 = pneg %p140
      %p236 = pneg %p169
      %p237 = pneg %p166
      %s238 = smul.u32 32, %s17
      %p239 = scmp.lt.s32.totalorder %s238, 63
      %s240 = scalar_select %p239, %s238, 63
      %s241 = smul.addr %s240, 8
      %s242 = scalar_lea.vmem %s6, %s241
      %s243 = smul.u32 32, %s17
      %p244 = scmp.lt.s32.totalorder %s243, 63
      %s245 = scalar_select %p244, %s243, 63
      %s246 = smul.addr %s245, 8
      %s247 = scalar_lea.vmem %s0, %s246
      %s248 = smul.u32 32, %s17
      %s249 = smul.u32 32, %s17
      %p250 = scmp.lt.s32.totalorder %s249, 63
      %s251 = scalar_select %p250, %s249, 63
      %s252 = smul.addr %s251, 8
      %s253 = scalar_lea.vmem %s6, %s252
      %s254 = smul.u32 32, %s17
      %v255 = vld [vmem:[%s247] sm:$0xff]
      %v256 = vld [vmem:[%s247 + $0x8] sm:$0xff]
      %v257 = vld [vmem:[%s247 + $0x10] sm:$0xff]
      %v258 = vld [vmem:[%s247 + $0x18] sm:$0xff]
      %v259 = vld [vmem:[%s247 + $0x20] sm:$0xff]
      %v260 = vld [vmem:[%s247 + $0x28] sm:$0xff]
      %v261 = vld [vmem:[%s247 + $0x30] sm:$0xff]
      %v262 = vld [vmem:[%s247 + $0x38] sm:$0xff]
      %v263 = vld [vmem:[%s247 + $0x40] sm:$0xff]
      %v264 = vld [vmem:[%s247 + $0x48] sm:$0xff]
      %v265 = vld [vmem:[%s247 + $0x50] sm:$0xff]
      %v266 = vld [vmem:[%s247 + $0x58] sm:$0xff]
      %v267 = vld [vmem:[%s247 + $0x60] sm:$0xff]
      %v268 = vld [vmem:[%s247 + $0x68] sm:$0xff]
      %v269 = vld [vmem:[%s247 + $0x70] sm:$0xff]
      %v270 = vld [vmem:[%s247 + $0x78] sm:$0xff]
      %v271 = vld [vmem:[%s247 + $0x80] sm:$0xff]
      %v272 = vld [vmem:[%s247 + $0x88] sm:$0xff]
      %v273 = vld [vmem:[%s247 + $0x90] sm:$0xff]
      %v274 = vld [vmem:[%s247 + $0x98] sm:$0xff]
      %v275 = vld [vmem:[%s247 + $0xa0] sm:$0xff]
      %v276 = vld [vmem:[%s247 + $0xa8] sm:$0xff]
      %v277 = vld [vmem:[%s247 + $0xb0] sm:$0xff]
      %v278 = vld [vmem:[%s247 + $0xb8] sm:$0xff]
      %v279 = vld [vmem:[%s247 + $0xc0] sm:$0xff]
      %v280 = vld [vmem:[%s247 + $0xc8] sm:$0xff]
      %v281 = vld [vmem:[%s247 + $0xd0] sm:$0xff]
      %v282 = vld [vmem:[%s247 + $0xd8] sm:$0xff]
      %v283 = vld [vmem:[%s247 + $0xe0] sm:$0xff]
      %v284 = vld [vmem:[%s247 + $0xe8] sm:$0xff]
      %v285 = vld [vmem:[%s247 + $0xf0] sm:$0xff]
      %v286 = vld [vmem:[%s247 + $0xf8] sm:$0xff]
      %v287 = vld [vmem:[%s5] sm:$0x3f]
      %v288 = vld [vmem:[%s1] sm:$0xff]
      %v289 = vld [vmem:[%s1 + $0x8] sm:$0xff]
      %v290 = vld [vmem:[%s1 + $0x10] sm:$0x3]
      %v291 = vld [vmem:[%s1 + $0x18] sm:$0x3]
      %vm292 = vcmask 80896
      %v294 = vsel %vm292, %v255, 0
      %v297 = vsel %vm292, %v256, 0
      %v300 = vsel %vm292, %v257, 0
      %v303 = vsel %vm292, %v258, 0
      %v306 = vsel %vm292, %v259, 0
      %v309 = vsel %vm292, %v260, 0
      %v312 = vsel %vm292, %v261, 0
      %v315 = vsel %vm292, %v262, 0
      %v318 = vsel %vm292, %v263, 0
      %v321 = vsel %vm292, %v264, 0
      %v324 = vsel %vm292, %v265, 0
      %v327 = vsel %vm292, %v266, 0
      %v330 = vsel %vm292, %v267, 0
      %v333 = vsel %vm292, %v268, 0
      %v336 = vsel %vm292, %v269, 0
      %v339 = vsel %vm292, %v270, 0
      %v342 = vsel %vm292, %v271, 0
      %v345 = vsel %vm292, %v272, 0
      %v348 = vsel %vm292, %v273, 0
      %v351 = vsel %vm292, %v274, 0
      %v354 = vsel %vm292, %v275, 0
      %v357 = vsel %vm292, %v276, 0
      %v360 = vsel %vm292, %v277, 0
      %v363 = vsel %vm292, %v278, 0
      %v366 = vsel %vm292, %v279, 0
      %v369 = vsel %vm292, %v280, 0
      %v372 = vsel %vm292, %v281, 0
      %v375 = vsel %vm292, %v282, 0
      %v378 = vsel %vm292, %v283, 0
      %v381 = vsel %vm292, %v284, 0
      %v384 = vsel %vm292, %v285, 0
      %v387 = vsel %vm292, %v286, 0
      %vm389 = vcmask 1041408
      %v391 = vsel %vm389, %v290, 0
      %v394 = vsel %vm389, %v291, 0
      %396 = vmatprep.subr.mxu0 %v289
      %397 = vmatpush1.msra.mxu0 %v288
      %398 = vmatprep.subr.mxu0 %v394
      %399 = vmatpush1.msra.mxu0 %v391
      %400 = vmatprep.subr.mxu0 0.0
      %401 = vmatpush1.msra.mxu0 0.0
      %402 = vmatprep.subr.mxu0 0.0
      %403 = vmatpush1.msra.mxu0 0.0
      %404 = vmatprep.subr.mxu0 0.0
      %405 = vmatpush1.msra.mxu0 0.0
      %406 = vmatprep.subr.mxu0 0.0
      %407 = vmatpush1.msra.mxu0 0.0
      %408 = vmatprep.subr.mxu0 0.0
      %409 = vmatpush1.msra.mxu0 0.0
      %410 = vmatprep.subr.mxu0 0.0
      %411 = vmatpush1.msra.mxu0 0.0
      %412 = vmatprep.subr.mxu0 0.0
      %413 = vmatpush1.msra.mxu0 0.0
      %414 = vmatprep.subr.mxu0 0.0
      %415 = vmatpush1.msra.mxu0 0.0
      %416 = vmatprep.subr.mxu0 0.0
      %417 = vmatpush1.msra.mxu0 0.0
      %418 = vmatprep.subr.mxu0 0.0
      %419 = vmatpush1.msra.mxu0 0.0
      %420 = vmatprep.subr.mxu0 0.0
      %421 = vmatpush1.msra.mxu0 0.0
      %422 = vmatprep.subr.mxu0 0.0
      %423 = vmatpush1.msra.mxu0 0.0
      %424 = vmatprep.subr.mxu0 0.0
      %425 = vmatpush1.msra.mxu0 0.0
      %426 = vmatprep.subr.mxu0 0.0
      %427 = vmatpush1.msra.mxu0 0.0
      %428 = vmatprep.subr.mxu0 0.0
      %429 = vmatpush1.msra.mxu0 0.0
      %430 = vmatprep.subr.mxu0 0.0
      %431 = vmatpush1.msra.mxu0 0.0
      %432 = vmatprep.subr.mxu0 0.0
      %433 = vmatpush1.msra.mxu0 0.0
      %434 = vmatprep.subr.mxu0 0.0
      %435 = vmatpush1.msra.mxu0 0.0
      %436 = vmatprep.subr.mxu0 0.0
      %437 = vmatpush1.msra.mxu0 0.0
      %438 = vmatprep.subr.mxu0 0.0
      %439 = vmatpush1.msra.mxu0 0.0
      %440 = vmatprep.subr.mxu0 0.0
      %441 = vmatpush1.msra.mxu0 0.0
      %442 = vmatprep.subr.mxu0 0.0
      %443 = vmatpush1.msra.mxu0 0.0
      %444 = vmatprep.subr.mxu0 0.0
      %445 = vmatpush1.msra.mxu0 0.0
      %446 = vmatprep.subr.mxu0 0.0
      %447 = vmatpush1.msra.mxu0 0.0
      %448 = vmatprep.subr.mxu0 0.0
      %449 = vmatpush1.msra.mxu0 0.0
      %450 = vmatprep.subr.mxu0 0.0
      %451 = vmatpush1.msra.mxu0 0.0
      %452 = vmatprep.subr.mxu0 0.0
      %453 = vmatpush1.msra.mxu0 0.0
      %454 = vmatprep.subr.mxu0 0.0
      %455 = vmatpush1.msra.mxu0 0.0
      %456 = vmatprep.subr.mxu0 0.0
      %457 = vmatpush1.msra.mxu0 0.0
      %458 = vmatprep.subr.mxu0 0.0
      %459 = vmatpush1.msra.mxu0 0.0
      %460 = vmatprep.mubr.f32.mxu0 0.0
      %461 = vmatmul.mubr.f32.gmra.mrb[0].mxu0 %v294
      %v462 = vpop.f32.mrb[0].mxu0
      %v463 = vadd.f32 0.0, %v462
      %v464 = vpop.f32.mrb[0].mxu0
      %v465 = vadd.f32 0.0, %v464
      %466 = vmatprep.mubr.f32.mxu0 0.0
      %467 = vmatmul.mubr.f32.gmra.mrb[0].mxu0 %v297
      %v468 = vpop.f32.mrb[0].mxu0
      %v469 = vadd.f32 0.0, %v468
      %v470 = vpop.f32.mrb[0].mxu0
      %v471 = vadd.f32 0.0, %v470
      %472 = vmatprep.mubr.f32.mxu0 0.0
      %473 = vmatmul.mubr.f32.gmra.mrb[0].mxu0 %v300
      %v474 = vpop.f32.mrb[0].mxu0
      %v475 = vadd.f32 0.0, %v474
      %v476 = vpop.f32.mrb[0].mxu0
      %v477 = vadd.f32 0.0, %v476
      %478 = vmatprep.mubr.f32.mxu0 0.0
      %479 = vmatmul.mubr.f32.gmra.mrb[0].mxu0 %v303
      %v480 = vpop.f32.mrb[0].mxu0
      %v481 = vadd.f32 0.0, %v480
      %v482 = vpop.f32.mrb[0].mxu0
      %v483 = vadd.f32 0.0, %v482
      %484 = vmatprep.mubr.f32.mxu0 0.0
      %485 = vmatmul.mubr.f32.gmra.mrb[0].mxu0 %v306
      %v486 = vpop.f32.mrb[0].mxu0
      %v487 = vadd.f32 0.0, %v486
      %v488 = vpop.f32.mrb[0].mxu0
      %v489 = vadd.f32 0.0, %v488
      %490 = vmatprep.mubr.f32.mxu0 0.0
      %491 = vmatmul.mubr.f32.gmra.mrb[0].mxu0 %v309
      %v492 = vpop.f32.mrb[0].mxu0
      %v493 = vadd.f32 0.0, %v492
      %v494 = vpop.f32.mrb[0].mxu0
      %v495 = vadd.f32 0.0, %v494
      %496 = vmatprep.mubr.f32.mxu0 0.0
      %497 = vmatmul.mubr.f32.gmra.mrb[0].mxu0 %v312
      %v498 = vpop.f32.mrb[0].mxu0
      %v499 = vadd.f32 0.0, %v498
      %v500 = vpop.f32.mrb[0].mxu0
      %v501 = vadd.f32 0.0, %v500
      %502 = vmatprep.mubr.f32.mxu0 0.0
      %503 = vmatmul.mubr.f32.gmra.mrb[0].mxu0 %v315
      %v504 = vpop.f32.mrb[0].mxu0
      %v505 = vadd.f32 0.0, %v504
      %v506 = vpop.f32.mrb[0].mxu0
      %v507 = vadd.f32 0.0, %v506
      %508 = vmatprep.mubr.f32.mxu0 0.0
      %509 = vmatmul.mubr.f32.gmra.mrb[0].mxu0 %v318
      %v510 = vpop.f32.mrb[0].mxu0
      %v511 = vadd.f32 0.0, %v510
      %v512 = vpop.f32.mrb[0].mxu0
      %v513 = vadd.f32 0.0, %v512
      %514 = vmatprep.mubr.f32.mxu0 0.0
      %515 = vmatmul.mubr.f32.gmra.mrb[0].mxu0 %v321
      %v516 = vpop.f32.mrb[0].mxu0
      %v517 = vadd.f32 0.0, %v516
      %v518 = vpop.f32.mrb[0].mxu0
      %v519 = vadd.f32 0.0, %v518
      %520 = vmatprep.mubr.f32.mxu0 0.0
      %521 = vmatmul.mubr.f32.gmra.mrb[0].mxu0 %v324
      %v522 = vpop.f32.mrb[0].mxu0
      %v523 = vadd.f32 0.0, %v522
      %v524 = vpop.f32.mrb[0].mxu0
      %v525 = vadd.f32 0.0, %v524
      %526 = vmatprep.mubr.f32.mxu0 0.0
      %527 = vmatmul.mubr.f32.gmra.mrb[0].mxu0 %v327
      %v528 = vpop.f32.mrb[0].mxu0
      %v529 = vadd.f32 0.0, %v528
      %v530 = vpop.f32.mrb[0].mxu0
      %v531 = vadd.f32 0.0, %v530
      %532 = vmatprep.mubr.f32.mxu0 0.0
      %533 = vmatmul.mubr.f32.gmra.mrb[0].mxu0 %v330
      %v534 = vpop.f32.mrb[0].mxu0
      %v535 = vadd.f32 0.0, %v534
      %v536 = vpop.f32.mrb[0].mxu0
      %v537 = vadd.f32 0.0, %v536
      %538 = vmatprep.mubr.f32.mxu0 0.0
      %539 = vmatmul.mubr.f32.gmra.mrb[0].mxu0 %v333
      %v540 = vpop.f32.mrb[0].mxu0
      %v541 = vadd.f32 0.0, %v540
      %v542 = vpop.f32.mrb[0].mxu0
      %v543 = vadd.f32 0.0, %v542
      %544 = vmatprep.mubr.f32.mxu0 0.0
      %545 = vmatmul.mubr.f32.gmra.mrb[0].mxu0 %v336
      %v546 = vpop.f32.mrb[0].mxu0
      %v547 = vadd.f32 0.0, %v546
      %v548 = vpop.f32.mrb[0].mxu0
      %v549 = vadd.f32 0.0, %v548
      %550 = vmatprep.mubr.f32.mxu0 0.0
      %551 = vmatmul.mubr.f32.gmra.mrb[0].mxu0 %v339
      %v552 = vpop.f32.mrb[0].mxu0
      %v553 = vadd.f32 0.0, %v552
      %v554 = vpop.f32.mrb[0].mxu0
      %v555 = vadd.f32 0.0, %v554
      %556 = vmatprep.mubr.f32.mxu0 0.0
      %557 = vmatmul.mubr.f32.gmra.mrb[0].mxu0 %v342
      %v558 = vpop.f32.mrb[0].mxu0
      %v559 = vadd.f32 0.0, %v558
      %v560 = vpop.f32.mrb[0].mxu0
      %v561 = vadd.f32 0.0, %v560
      %562 = vmatprep.mubr.f32.mxu0 0.0
      %563 = vmatmul.mubr.f32.gmra.mrb[0].mxu0 %v345
      %v564 = vpop.f32.mrb[0].mxu0
      %v565 = vadd.f32 0.0, %v564
      %v566 = vpop.f32.mrb[0].mxu0
      %v567 = vadd.f32 0.0, %v566
      %568 = vmatprep.mubr.f32.mxu0 0.0
      %569 = vmatmul.mubr.f32.gmra.mrb[0].mxu0 %v348
      %v570 = vpop.f32.mrb[0].mxu0
      %v571 = vadd.f32 0.0, %v570
      %v572 = vpop.f32.mrb[0].mxu0
      %v573 = vadd.f32 0.0, %v572
      %574 = vmatprep.mubr.f32.mxu0 0.0
      %575 = vmatmul.mubr.f32.gmra.mrb[0].mxu0 %v351
      %v576 = vpop.f32.mrb[0].mxu0
      %v577 = vadd.f32 0.0, %v576
      %v578 = vpop.f32.mrb[0].mxu0
      %v579 = vadd.f32 0.0, %v578
      %580 = vmatprep.mubr.f32.mxu0 0.0
      %581 = vmatmul.mubr.f32.gmra.mrb[0].mxu0 %v354
      %v582 = vpop.f32.mrb[0].mxu0
      %v583 = vadd.f32 0.0, %v582
      %v584 = vpop.f32.mrb[0].mxu0
      %v585 = vadd.f32 0.0, %v584
      %586 = vmatprep.mubr.f32.mxu0 0.0
      %587 = vmatmul.mubr.f32.gmra.mrb[0].mxu0 %v357
      %v588 = vpop.f32.mrb[0].mxu0
      %v589 = vadd.f32 0.0, %v588
      %v590 = vpop.f32.mrb[0].mxu0
      %v591 = vadd.f32 0.0, %v590
      %592 = vmatprep.mubr.f32.mxu0 0.0
      %593 = vmatmul.mubr.f32.gmra.mrb[0].mxu0 %v360
      %v594 = vpop.f32.mrb[0].mxu0
      %v595 = vadd.f32 0.0, %v594
      %v596 = vpop.f32.mrb[0].mxu0
      %v597 = vadd.f32 0.0, %v596
      %598 = vmatprep.mubr.f32.mxu0 0.0
      %599 = vmatmul.mubr.f32.gmra.mrb[0].mxu0 %v363
      %v600 = vpop.f32.mrb[0].mxu0
      %v601 = vadd.f32 0.0, %v600
      %v602 = vpop.f32.mrb[0].mxu0
      %v603 = vadd.f32 0.0, %v602
      %604 = vmatprep.mubr.f32.mxu0 0.0
      %605 = vmatmul.mubr.f32.gmra.mrb[0].mxu0 %v366
      %v606 = vpop.f32.mrb[0].mxu0
      %v607 = vadd.f32 0.0, %v606
      %v608 = vpop.f32.mrb[0].mxu0
      %v609 = vadd.f32 0.0, %v608
      %610 = vmatprep.mubr.f32.mxu0 0.0
      %611 = vmatmul.mubr.f32.gmra.mrb[0].mxu0 %v369
      %v612 = vpop.f32.mrb[0].mxu0
      %v613 = vadd.f32 0.0, %v612
      %v614 = vpop.f32.mrb[0].mxu0
      %v615 = vadd.f32 0.0, %v614
      %616 = vmatprep.mubr.f32.mxu0 0.0
      %617 = vmatmul.mubr.f32.gmra.mrb[0].mxu0 %v372
      %v618 = vpop.f32.mrb[0].mxu0
      %v619 = vadd.f32 0.0, %v618
      %v620 = vpop.f32.mrb[0].mxu0
      %v621 = vadd.f32 0.0, %v620
      %622 = vmatprep.mubr.f32.mxu0 0.0
      %623 = vmatmul.mubr.f32.gmra.mrb[0].mxu0 %v375
      %v624 = vpop.f32.mrb[0].mxu0
      %v625 = vadd.f32 0.0, %v624
      %v626 = vpop.f32.mrb[0].mxu0
      %v627 = vadd.f32 0.0, %v626
      %628 = vmatprep.mubr.f32.mxu0 0.0
      %629 = vmatmul.mubr.f32.gmra.mrb[0].mxu0 %v378
      %v630 = vpop.f32.mrb[0].mxu0
      %v631 = vadd.f32 0.0, %v630
      %v632 = vpop.f32.mrb[0].mxu0
      %v633 = vadd.f32 0.0, %v632
      %634 = vmatprep.mubr.f32.mxu0 0.0
      %635 = vmatmul.mubr.f32.gmra.mrb[0].mxu0 %v381
      %v636 = vpop.f32.mrb[0].mxu0
      %v637 = vadd.f32 0.0, %v636
      %v638 = vpop.f32.mrb[0].mxu0
      %v639 = vadd.f32 0.0, %v638
      %640 = vmatprep.mubr.f32.mxu0 0.0
      %641 = vmatmul.mubr.f32.gmra.mrb[0].mxu0 %v384
      %v642 = vpop.f32.mrb[0].mxu0
      %v643 = vadd.f32 0.0, %v642
      %v644 = vpop.f32.mrb[0].mxu0
      %v645 = vadd.f32 0.0, %v644
      %646 = vmatprep.mubr.f32.mxu0 0.0
      %647 = vmatmul.mubr.f32.gmra.mrb[0].mxu0 %v387
      %v648 = vpop.f32.mrb[0].mxu0
      %v649 = vadd.f32 0.0, %v648
      %v650 = vpop.f32.mrb[0].mxu0
      %v651 = vadd.f32 0.0, %v650
      %652 = vdwg.mxu0
      %v653 = vlaneseq
      %v654 = vshrl.u32 %v653, 7
      %v655 = vsub.s32 0, %v654
      %v656 = vrot.slane %v287, %v655
      %v657 = vadd.f32 %v463, %v656
      %v658 = vadd.f32 %v469, %v656
      %v659 = vadd.f32 %v475, %v656
      %v660 = vadd.f32 %v481, %v656
      %v661 = vadd.f32 %v487, %v656
      %v662 = vadd.f32 %v493, %v656
      %v663 = vadd.f32 %v499, %v656
      %v664 = vadd.f32 %v505, %v656
      %v665 = vadd.f32 %v511, %v656
      %v666 = vadd.f32 %v517, %v656
      %v667 = vadd.f32 %v523, %v656
      %v668 = vadd.f32 %v529, %v656
      %v669 = vadd.f32 %v535, %v656
      %v670 = vadd.f32 %v541, %v656
      %v671 = vadd.f32 %v547, %v656
      %v672 = vadd.f32 %v553, %v656
      %v673 = vadd.f32 %v559, %v656
      %v674 = vadd.f32 %v565, %v656
      %v675 = vadd.f32 %v571, %v656
      %v676 = vadd.f32 %v577, %v656
      %v677 = vadd.f32 %v583, %v656
      %v678 = vadd.f32 %v589, %v656
      %v679 = vadd.f32 %v595, %v656
      %v680 = vadd.f32 %v601, %v656
      %v681 = vadd.f32 %v607, %v656
      %v682 = vadd.f32 %v613, %v656
      %v683 = vadd.f32 %v619, %v656
      %v684 = vadd.f32 %v625, %v656
      %v685 = vadd.f32 %v631, %v656
      %v686 = vadd.f32 %v637, %v656
      %v687 = vadd.f32 %v643, %v656
      %v688 = vadd.f32 %v649, %v656
      %v689 = vmax.f32 %v657, 0.0
      %v690 = vmax.f32 %v658, 0.0
      %v691 = vmax.f32 %v659, 0.0
      %v692 = vmax.f32 %v660, 0.0
      %v693 = vmax.f32 %v661, 0.0
      %v694 = vmax.f32 %v662, 0.0
      %v695 = vmax.f32 %v663, 0.0
      %v696 = vmax.f32 %v664, 0.0
      %v697 = vmax.f32 %v665, 0.0
      %v698 = vmax.f32 %v666, 0.0
      %v699 = vmax.f32 %v667, 0.0
      %v700 = vmax.f32 %v668, 0.0
      %v701 = vmax.f32 %v669, 0.0
      %v702 = vmax.f32 %v670, 0.0
      %v703 = vmax.f32 %v671, 0.0
      %v704 = vmax.f32 %v672, 0.0
      %v705 = vmax.f32 %v673, 0.0
      %v706 = vmax.f32 %v674, 0.0
      %v707 = vmax.f32 %v675, 0.0
      %v708 = vmax.f32 %v676, 0.0
      %v709 = vmax.f32 %v677, 0.0
      %v710 = vmax.f32 %v678, 0.0
      %v711 = vmax.f32 %v679, 0.0
      %v712 = vmax.f32 %v680, 0.0
      %v713 = vmax.f32 %v681, 0.0
      %v714 = vmax.f32 %v682, 0.0
      %v715 = vmax.f32 %v683, 0.0
      %v716 = vmax.f32 %v684, 0.0
      %v717 = vmax.f32 %v685, 0.0
      %v718 = vmax.f32 %v686, 0.0
      %v719 = vmax.f32 %v687, 0.0
      %v720 = vmax.f32 %v688, 0.0
      %v721 = vld [vmem:[%s3] sm:$0xff]
      %v722 = vld [vmem:[%s3 + $0x8] sm:$0xff]
      %v723 = vld [vmem:[%s3 + $0x10] sm:$0xff]
      %v724 = vld [vmem:[%s3 + $0x18] sm:$0xff]
      %v725 = vld [vmem:[%s3 + $0x20] sm:$0xff]
      %v726 = vld [vmem:[%s3 + $0x28] sm:$0xff]
      %v727 = vld [vmem:[%s3 + $0x30] sm:$0xff]
      %v728 = vld [vmem:[%s3 + $0x38] sm:$0xff]
      %v729 = vld [vmem:[%s3 + $0x40] sm:$0xff]
      %v730 = vld [vmem:[%s3 + $0x48] sm:$0xff]
      %v731 = vld [vmem:[%s3 + $0x50] sm:$0xff]
      %v732 = vld [vmem:[%s3 + $0x58] sm:$0xff]
      %v733 = vld [vmem:[%s3 + $0x60] sm:$0xff]
      %v734 = vld [vmem:[%s3 + $0x68] sm:$0xff]
      %v735 = vld [vmem:[%s3 + $0x70] sm:$0xff]
      %v736 = vld [vmem:[%s3 + $0x78] sm:$0xff]
      %v737 = vlaneseq
      %v738 = vshrl.u32 %v737, 7
      %v739 = vsub.s32 2, %v738
      %v740 = vrot.slane %v287, %v739
      %741 = vmatprep.subr.mxu0 0.0
      %742 = vmatpush1.msra.mxu0 %v721
      %743 = vmatprep.subr.mxu0 0.0
      %744 = vmatpush1.msra.mxu0 %v722
      %745 = vmatprep.subr.mxu0 0.0
      %746 = vmatpush1.msra.mxu0 %v723
      %747 = vmatprep.subr.mxu0 0.0
      %748 = vmatpush1.msra.mxu0 %v724
      %749 = vmatprep.subr.mxu0 0.0
      %750 = vmatpush1.msra.mxu0 %v725
      %751 = vmatprep.subr.mxu0 0.0
      %752 = vmatpush1.msra.mxu0 %v726
      %753 = vmatprep.subr.mxu0 0.0
      %754 = vmatpush1.msra.mxu0 %v727
      %755 = vmatprep.subr.mxu0 0.0
      %756 = vmatpush1.msra.mxu0 %v728
      %757 = vmatprep.subr.mxu0 0.0
      %758 = vmatpush1.msra.mxu0 %v729
      %759 = vmatprep.subr.mxu0 0.0
      %760 = vmatpush1.msra.mxu0 %v730
      %761 = vmatprep.subr.mxu0 0.0
      %762 = vmatpush1.msra.mxu0 %v731
      %763 = vmatprep.subr.mxu0 0.0
      %764 = vmatpush1.msra.mxu0 %v732
      %765 = vmatprep.subr.mxu0 0.0
      %766 = vmatpush1.msra.mxu0 %v733
      %767 = vmatprep.subr.mxu0 0.0
      %768 = vmatpush1.msra.mxu0 %v734
      %769 = vmatprep.subr.mxu0 0.0
      %770 = vmatpush1.msra.mxu0 %v735
      %771 = vmatprep.subr.mxu0 0.0
      %772 = vmatpush1.msra.mxu0 %v736
      %773 = vmatprep.subr.mxu0 0.0
      %774 = vmatpush1.msra.mxu0 0.0
      %775 = vmatprep.subr.mxu0 0.0
      %776 = vmatpush1.msra.mxu0 0.0
      %777 = vmatprep.subr.mxu0 0.0
      %778 = vmatpush1.msra.mxu0 0.0
      %779 = vmatprep.subr.mxu0 0.0
      %780 = vmatpush1.msra.mxu0 0.0
      %781 = vmatprep.subr.mxu0 0.0
      %782 = vmatpush1.msra.mxu0 0.0
      %783 = vmatprep.subr.mxu0 0.0
      %784 = vmatpush1.msra.mxu0 0.0
      %785 = vmatprep.subr.mxu0 0.0
      %786 = vmatpush1.msra.mxu0 0.0
      %787 = vmatprep.subr.mxu0 0.0
      %788 = vmatpush1.msra.mxu0 0.0
      %789 = vmatprep.subr.mxu0 0.0
      %790 = vmatpush1.msra.mxu0 0.0
      %791 = vmatprep.subr.mxu0 0.0
      %792 = vmatpush1.msra.mxu0 0.0
      %793 = vmatprep.subr.mxu0 0.0
      %794 = vmatpush1.msra.mxu0 0.0
      %795 = vmatprep.subr.mxu0 0.0
      %796 = vmatpush1.msra.mxu0 0.0
      %797 = vmatprep.subr.mxu0 0.0
      %798 = vmatpush1.msra.mxu0 0.0
      %799 = vmatprep.subr.mxu0 0.0
      %800 = vmatpush1.msra.mxu0 0.0
      %801 = vmatprep.subr.mxu0 0.0
      %802 = vmatpush1.msra.mxu0 0.0
      %803 = vmatprep.subr.mxu0 0.0
      %804 = vmatpush1.msra.mxu0 0.0
      %805 = vmatprep.mubr.f32.mxu0 0.0
      %806 = vmatmul.mubr.f32.gmra.mrb[0].mxu0 %v689
      %v807 = vpop.f32.mrb[0].mxu0
      %v808 = vadd.f32 %v740, %v807
      %v809 = vpop.f32.mrb[0].mxu0
      %810 = vmatprep.mubr.f32.mxu0 0.0
      %811 = vmatmul.mubr.f32.gmra.mrb[0].mxu0 %v690
      %v812 = vpop.f32.mrb[0].mxu0
      %v813 = vadd.f32 %v740, %v812
      %v814 = vpop.f32.mrb[0].mxu0
      %815 = vmatprep.mubr.f32.mxu0 0.0
      %816 = vmatmul.mubr.f32.gmra.mrb[0].mxu0 %v691
      %v817 = vpop.f32.mrb[0].mxu0
      %v818 = vadd.f32 %v740, %v817
      %v819 = vpop.f32.mrb[0].mxu0
      %820 = vmatprep.mubr.f32.mxu0 0.0
      %821 = vmatmul.mubr.f32.gmra.mrb[0].mxu0 %v692
      %v822 = vpop.f32.mrb[0].mxu0
      %v823 = vadd.f32 %v740, %v822
      %v824 = vpop.f32.mrb[0].mxu0
      %825 = vmatprep.mubr.f32.mxu0 0.0
      %826 = vmatmul.mubr.f32.gmra.mrb[0].mxu0 %v693
      %v827 = vpop.f32.mrb[0].mxu0
      %v828 = vadd.f32 %v740, %v827
      %v829 = vpop.f32.mrb[0].mxu0
      %830 = vmatprep.mubr.f32.mxu0 0.0
      %831 = vmatmul.mubr.f32.gmra.mrb[0].mxu0 %v694
      %v832 = vpop.f32.mrb[0].mxu0
      %v833 = vadd.f32 %v740, %v832
      %v834 = vpop.f32.mrb[0].mxu0
      %835 = vmatprep.mubr.f32.mxu0 0.0
      %836 = vmatmul.mubr.f32.gmra.mrb[0].mxu0 %v695
      %v837 = vpop.f32.mrb[0].mxu0
      %v838 = vadd.f32 %v740, %v837
      %v839 = vpop.f32.mrb[0].mxu0
      %840 = vmatprep.mubr.f32.mxu0 0.0
      %841 = vmatmul.mubr.f32.gmra.mrb[0].mxu0 %v696
      %v842 = vpop.f32.mrb[0].mxu0
      %v843 = vadd.f32 %v740, %v842
      %v844 = vpop.f32.mrb[0].mxu0
      %845 = vmatprep.mubr.f32.mxu0 0.0
      %846 = vmatmul.mubr.f32.gmra.mrb[0].mxu0 %v697
      %v847 = vpop.f32.mrb[0].mxu0
      %v848 = vadd.f32 %v740, %v847
      %v849 = vpop.f32.mrb[0].mxu0
      %850 = vmatprep.mubr.f32.mxu0 0.0
      %851 = vmatmul.mubr.f32.gmra.mrb[0].mxu0 %v698
      %v852 = vpop.f32.mrb[0].mxu0
      %v853 = vadd.f32 %v740, %v852
      %v854 = vpop.f32.mrb[0].mxu0
      %855 = vmatprep.mubr.f32.mxu0 0.0
      %856 = vmatmul.mubr.f32.gmra.mrb[0].mxu0 %v699
      %v857 = vpop.f32.mrb[0].mxu0
      %v858 = vadd.f32 %v740, %v857
      %v859 = vpop.f32.mrb[0].mxu0
      %860 = vmatprep.mubr.f32.mxu0 0.0
      %861 = vmatmul.mubr.f32.gmra.mrb[0].mxu0 %v700
      %v862 = vpop.f32.mrb[0].mxu0
      %v863 = vadd.f32 %v740, %v862
      %v864 = vpop.f32.mrb[0].mxu0
      %865 = vmatprep.mubr.f32.mxu0 0.0
      %866 = vmatmul.mubr.f32.gmra.mrb[0].mxu0 %v701
      %v867 = vpop.f32.mrb[0].mxu0
      %v868 = vadd.f32 %v740, %v867
      %v869 = vpop.f32.mrb[0].mxu0
      %870 = vmatprep.mubr.f32.mxu0 0.0
      %871 = vmatmul.mubr.f32.gmra.mrb[0].mxu0 %v702
      %v872 = vpop.f32.mrb[0].mxu0
      %v873 = vadd.f32 %v740, %v872
      %v874 = vpop.f32.mrb[0].mxu0
      %875 = vmatprep.mubr.f32.mxu0 0.0
      %876 = vmatmul.mubr.f32.gmra.mrb[0].mxu0 %v703
      %v877 = vpop.f32.mrb[0].mxu0
      %v878 = vadd.f32 %v740, %v877
      %v879 = vpop.f32.mrb[0].mxu0
      %880 = vmatprep.mubr.f32.mxu0 0.0
      %881 = vmatmul.mubr.f32.gmra.mrb[0].mxu0 %v704
      %v882 = vpop.f32.mrb[0].mxu0
      %v883 = vadd.f32 %v740, %v882
      %v884 = vpop.f32.mrb[0].mxu0
      %885 = vmatprep.mubr.f32.mxu0 0.0
      %886 = vmatmul.mubr.f32.gmra.mrb[0].mxu0 %v705
      %v887 = vpop.f32.mrb[0].mxu0
      %v888 = vadd.f32 %v740, %v887
      %v889 = vpop.f32.mrb[0].mxu0
      %890 = vmatprep.mubr.f32.mxu0 0.0
      %891 = vmatmul.mubr.f32.gmra.mrb[0].mxu0 %v706
      %v892 = vpop.f32.mrb[0].mxu0
      %v893 = vadd.f32 %v740, %v892
      %v894 = vpop.f32.mrb[0].mxu0
      %895 = vmatprep.mubr.f32.mxu0 0.0
      %896 = vmatmul.mubr.f32.gmra.mrb[0].mxu0 %v707
      %v897 = vpop.f32.mrb[0].mxu0
      %v898 = vadd.f32 %v740, %v897
      %v899 = vpop.f32.mrb[0].mxu0
      %900 = vmatprep.mubr.f32.mxu0 0.0
      %901 = vmatmul.mubr.f32.gmra.mrb[0].mxu0 %v708
      %v902 = vpop.f32.mrb[0].mxu0
      %v903 = vadd.f32 %v740, %v902
      %v904 = vpop.f32.mrb[0].mxu0
      %905 = vmatprep.mubr.f32.mxu0 0.0
      %906 = vmatmul.mubr.f32.gmra.mrb[0].mxu0 %v709
      %v907 = vpop.f32.mrb[0].mxu0
      %v908 = vadd.f32 %v740, %v907
      %v909 = vpop.f32.mrb[0].mxu0
      %910 = vmatprep.mubr.f32.mxu0 0.0
      %911 = vmatmul.mubr.f32.gmra.mrb[0].mxu0 %v710
      %v912 = vpop.f32.mrb[0].mxu0
      %v913 = vadd.f32 %v740, %v912
      %v914 = vpop.f32.mrb[0].mxu0
      %915 = vmatprep.mubr.f32.mxu0 0.0
      %916 = vmatmul.mubr.f32.gmra.mrb[0].mxu0 %v711
      %v917 = vpop.f32.mrb[0].mxu0
      %v918 = vadd.f32 %v740, %v917
      %v919 = vpop.f32.mrb[0].mxu0
      %920 = vmatprep.mubr.f32.mxu0 0.0
      %921 = vmatmul.mubr.f32.gmra.mrb[0].mxu0 %v712
      %v922 = vpop.f32.mrb[0].mxu0
      %v923 = vadd.f32 %v740, %v922
      %v924 = vpop.f32.mrb[0].mxu0
      %925 = vmatprep.mubr.f32.mxu0 0.0
      %926 = vmatmul.mubr.f32.gmra.mrb[0].mxu0 %v713
      %v927 = vpop.f32.mrb[0].mxu0
      %v928 = vadd.f32 %v740, %v927
      %v929 = vpop.f32.mrb[0].mxu0
      %930 = vmatprep.mubr.f32.mxu0 0.0
      %931 = vmatmul.mubr.f32.gmra.mrb[0].mxu0 %v714
      %v932 = vpop.f32.mrb[0].mxu0
      %v933 = vadd.f32 %v740, %v932
      %v934 = vpop.f32.mrb[0].mxu0
      %935 = vmatprep.mubr.f32.mxu0 0.0
      %936 = vmatmul.mubr.f32.gmra.mrb[0].mxu0 %v715
      %v937 = vpop.f32.mrb[0].mxu0
      %v938 = vadd.f32 %v740, %v937
      %v939 = vpop.f32.mrb[0].mxu0
      %940 = vmatprep.mubr.f32.mxu0 0.0
      %941 = vmatmul.mubr.f32.gmra.mrb[0].mxu0 %v716
      %v942 = vpop.f32.mrb[0].mxu0
      %v943 = vadd.f32 %v740, %v942
      %v944 = vpop.f32.mrb[0].mxu0
      %945 = vmatprep.mubr.f32.mxu0 0.0
      %946 = vmatmul.mubr.f32.gmra.mrb[0].mxu0 %v717
      %v947 = vpop.f32.mrb[0].mxu0
      %v948 = vadd.f32 %v740, %v947
      %v949 = vpop.f32.mrb[0].mxu0
      %950 = vmatprep.mubr.f32.mxu0 0.0
      %951 = vmatmul.mubr.f32.gmra.mrb[0].mxu0 %v718
      %v952 = vpop.f32.mrb[0].mxu0
      %v953 = vadd.f32 %v740, %v952
      %v954 = vpop.f32.mrb[0].mxu0
      %955 = vmatprep.mubr.f32.mxu0 0.0
      %956 = vmatmul.mubr.f32.gmra.mrb[0].mxu0 %v719
      %v957 = vpop.f32.mrb[0].mxu0
      %v958 = vadd.f32 %v740, %v957
      %v959 = vpop.f32.mrb[0].mxu0
      %960 = vmatprep.mubr.f32.mxu0 0.0
      %961 = vmatmul.mubr.f32.gmra.mrb[0].mxu0 %v720
      %v962 = vpop.f32.mrb[0].mxu0
      %v963 = vadd.f32 %v740, %v962
      %v964 = vpop.f32.mrb[0].mxu0
      %965 = vdwg.mxu0
      %966 = vmax.xlane.f32.xlu0 %v808
      %v967 = vpop.xlane.xlu0 %966
      %968 = vmax.xlane.f32.xlu0 %v813
      %v969 = vpop.xlane.xlu0 %968
      %970 = vmax.xlane.f32.xlu0 %v818
      %v971 = vpop.xlane.xlu0 %970
      %972 = vmax.xlane.f32.xlu0 %v823
      %v973 = vpop.xlane.xlu0 %972
      %974 = vmax.xlane.f32.xlu0 %v828
      %v975 = vpop.xlane.xlu0 %974
      %976 = vmax.xlane.f32.xlu0 %v833
      %v977 = vpop.xlane.xlu0 %976
      %978 = vmax.xlane.f32.xlu0 %v838
      %v979 = vpop.xlane.xlu0 %978
      %980 = vmax.xlane.f32.xlu0 %v843
      %v981 = vpop.xlane.xlu0 %980
      %982 = vmax.xlane.f32.xlu0 %v848
      %v983 = vpop.xlane.xlu0 %982
      %984 = vmax.xlane.f32.xlu0 %v853
      %v985 = vpop.xlane.xlu0 %984
      %986 = vmax.xlane.f32.xlu0 %v858
      %v987 = vpop.xlane.xlu0 %986
      %988 = vmax.xlane.f32.xlu0 %v863
      %v989 = vpop.xlane.xlu0 %988
      %990 = vmax.xlane.f32.xlu0 %v868
      %v991 = vpop.xlane.xlu0 %990
      %992 = vmax.xlane.f32.xlu0 %v873
      %v993 = vpop.xlane.xlu0 %992
      %994 = vmax.xlane.f32.xlu0 %v878
      %v995 = vpop.xlane.xlu0 %994
      %996 = vmax.xlane.f32.xlu0 %v883
      %v997 = vpop.xlane.xlu0 %996
      %998 = vmax.xlane.f32.xlu0 %v888
      %v999 = vpop.xlane.xlu0 %998
      %1000 = vmax.xlane.f32.xlu0 %v893
      %v1001 = vpop.xlane.xlu0 %1000
      %1002 = vmax.xlane.f32.xlu0 %v898
      %v1003 = vpop.xlane.xlu0 %1002
      %1004 = vmax.xlane.f32.xlu0 %v903
      %v1005 = vpop.xlane.xlu0 %1004
      %1006 = vmax.xlane.f32.xlu0 %v908
      %v1007 = vpop.xlane.xlu0 %1006
      %1008 = vmax.xlane.f32.xlu0 %v913
      %v1009 = vpop.xlane.xlu0 %1008
      %1010 = vmax.xlane.f32.xlu0 %v918
      %v1011 = vpop.xlane.xlu0 %1010
      %1012 = vmax.xlane.f32.xlu0 %v923
      %v1013 = vpop.xlane.xlu0 %1012
      %1014 = vmax.xlane.f32.xlu0 %v928
      %v1015 = vpop.xlane.xlu0 %1014
      %1016 = vmax.xlane.f32.xlu0 %v933
      %v1017 = vpop.xlane.xlu0 %1016
      %1018 = vmax.xlane.f32.xlu0 %v938
      %v1019 = vpop.xlane.xlu0 %1018
      %1020 = vmax.xlane.f32.xlu0 %v943
      %v1021 = vpop.xlane.xlu0 %1020
      %1022 = vmax.xlane.f32.xlu0 %v948
      %v1023 = vpop.xlane.xlu0 %1022
      %1024 = vmax.xlane.f32.xlu0 %v953
      %v1025 = vpop.xlane.xlu0 %1024
      %1026 = vmax.xlane.f32.xlu0 %v958
      %v1027 = vpop.xlane.xlu0 %1026
      %1028 = vmax.xlane.f32.xlu0 %v963
      %v1029 = vpop.xlane.xlu0 %1028
      %v1030 = vsub.f32 %v808, %v967
      %v1031 = vsub.f32 %v813, %v969
      %v1032 = vsub.f32 %v818, %v971
      %v1033 = vsub.f32 %v823, %v973
      %v1034 = vsub.f32 %v828, %v975
      %v1035 = vsub.f32 %v833, %v977
      %v1036 = vsub.f32 %v838, %v979
      %v1037 = vsub.f32 %v843, %v981
      %v1038 = vsub.f32 %v848, %v983
      %v1039 = vsub.f32 %v853, %v985
      %v1040 = vsub.f32 %v858, %v987
      %v1041 = vsub.f32 %v863, %v989
      %v1042 = vsub.f32 %v868, %v991
      %v1043 = vsub.f32 %v873, %v993
      %v1044 = vsub.f32 %v878, %v995
      %v1045 = vsub.f32 %v883, %v997
      %v1046 = vsub.f32 %v888, %v999
      %v1047 = vsub.f32 %v893, %v1001
      %v1048 = vsub.f32 %v898, %v1003
      %v1049 = vsub.f32 %v903, %v1005
      %v1050 = vsub.f32 %v908, %v1007
      %v1051 = vsub.f32 %v913, %v1009
      %v1052 = vsub.f32 %v918, %v1011
      %v1053 = vsub.f32 %v923, %v1013
      %v1054 = vsub.f32 %v928, %v1015
      %v1055 = vsub.f32 %v933, %v1017
      %v1056 = vsub.f32 %v938, %v1019
      %v1057 = vsub.f32 %v943, %v1021
      %v1058 = vsub.f32 %v948, %v1023
      %v1059 = vsub.f32 %v953, %v1025
      %v1060 = vsub.f32 %v958, %v1027
      %v1061 = vsub.f32 %v963, %v1029
      %v1062 = vmul.f32 %v1030, 1.442695
      %v1063 = vpow.pop %v1062
      %v1064 = vmul.f32 %v1031, 1.442695
      %v1065 = vpow.pop %v1064
      %v1066 = vmul.f32 %v1032, 1.442695
      %v1067 = vpow.pop %v1066
      %v1068 = vmul.f32 %v1033, 1.442695
      %v1069 = vpow.pop %v1068
      %v1070 = vmul.f32 %v1034, 1.442695
      %v1071 = vpow.pop %v1070
      %v1072 = vmul.f32 %v1035, 1.442695
      %v1073 = vpow.pop %v1072
      %v1074 = vmul.f32 %v1036, 1.442695
      %v1075 = vpow.pop %v1074
      %v1076 = vmul.f32 %v1037, 1.442695
      %v1077 = vpow.pop %v1076
      %v1078 = vmul.f32 %v1038, 1.442695
      %v1079 = vpow.pop %v1078
      %v1080 = vmul.f32 %v1039, 1.442695
      %v1081 = vpow.pop %v1080
      %v1082 = vmul.f32 %v1040, 1.442695
      %v1083 = vpow.pop %v1082
      %v1084 = vmul.f32 %v1041, 1.442695
      %v1085 = vpow.pop %v1084
      %v1086 = vmul.f32 %v1042, 1.442695
      %v1087 = vpow.pop %v1086
      %v1088 = vmul.f32 %v1043, 1.442695
      %v1089 = vpow.pop %v1088
      %v1090 = vmul.f32 %v1044, 1.442695
      %v1091 = vpow.pop %v1090
      %v1092 = vmul.f32 %v1045, 1.442695
      %v1093 = vpow.pop %v1092
      %v1094 = vmul.f32 %v1046, 1.442695
      %v1095 = vpow.pop %v1094
      %v1096 = vmul.f32 %v1047, 1.442695
      %v1097 = vpow.pop %v1096
      %v1098 = vmul.f32 %v1048, 1.442695
      %v1099 = vpow.pop %v1098
      %v1100 = vmul.f32 %v1049, 1.442695
      %v1101 = vpow.pop %v1100
      %v1102 = vmul.f32 %v1050, 1.442695
      %v1103 = vpow.pop %v1102
      %v1104 = vmul.f32 %v1051, 1.442695
      %v1105 = vpow.pop %v1104
      %v1106 = vmul.f32 %v1052, 1.442695
      %v1107 = vpow.pop %v1106
      %v1108 = vmul.f32 %v1053, 1.442695
      %v1109 = vpow.pop %v1108
      %v1110 = vmul.f32 %v1054, 1.442695
      %v1111 = vpow.pop %v1110
      %v1112 = vmul.f32 %v1055, 1.442695
      %v1113 = vpow.pop %v1112
      %v1114 = vmul.f32 %v1056, 1.442695
      %v1115 = vpow.pop %v1114
      %v1116 = vmul.f32 %v1057, 1.442695
      %v1117 = vpow.pop %v1116
      %v1118 = vmul.f32 %v1058, 1.442695
      %v1119 = vpow.pop %v1118
      %v1120 = vmul.f32 %v1059, 1.442695
      %v1121 = vpow.pop %v1120
      %v1122 = vmul.f32 %v1060, 1.442695
      %v1123 = vpow.pop %v1122
      %v1124 = vmul.f32 %v1061, 1.442695
      %v1125 = vpow.pop %v1124
      %1126 = vadd.xlane.f32.xlu0 %v1063
      %v1127 = vpop.xlane.xlu0 %1126
      %1128 = vadd.xlane.f32.xlu0 %v1065
      %v1129 = vpop.xlane.xlu0 %1128
      %1130 = vadd.xlane.f32.xlu0 %v1067
      %v1131 = vpop.xlane.xlu0 %1130
      %1132 = vadd.xlane.f32.xlu0 %v1069
      %v1133 = vpop.xlane.xlu0 %1132
      %1134 = vadd.xlane.f32.xlu0 %v1071
      %v1135 = vpop.xlane.xlu0 %1134
      %1136 = vadd.xlane.f32.xlu0 %v1073
      %v1137 = vpop.xlane.xlu0 %1136
      %1138 = vadd.xlane.f32.xlu0 %v1075
      %v1139 = vpop.xlane.xlu0 %1138
      %1140 = vadd.xlane.f32.xlu0 %v1077
      %v1141 = vpop.xlane.xlu0 %1140
      %1142 = vadd.xlane.f32.xlu0 %v1079
      %v1143 = vpop.xlane.xlu0 %1142
      %1144 = vadd.xlane.f32.xlu0 %v1081
      %v1145 = vpop.xlane.xlu0 %1144
      %1146 = vadd.xlane.f32.xlu0 %v1083
      %v1147 = vpop.xlane.xlu0 %1146
      %1148 = vadd.xlane.f32.xlu0 %v1085
      %v1149 = vpop.xlane.xlu0 %1148
      %1150 = vadd.xlane.f32.xlu0 %v1087
      %v1151 = vpop.xlane.xlu0 %1150
      %1152 = vadd.xlane.f32.xlu0 %v1089
      %v1153 = vpop.xlane.xlu0 %1152
      %1154 = vadd.xlane.f32.xlu0 %v1091
      %v1155 = vpop.xlane.xlu0 %1154
      %1156 = vadd.xlane.f32.xlu0 %v1093
      %v1157 = vpop.xlane.xlu0 %1156
      %1158 = vadd.xlane.f32.xlu0 %v1095
      %v1159 = vpop.xlane.xlu0 %1158
      %1160 = vadd.xlane.f32.xlu0 %v1097
      %v1161 = vpop.xlane.xlu0 %1160
      %1162 = vadd.xlane.f32.xlu0 %v1099
      %v1163 = vpop.xlane.xlu0 %1162
      %1164 = vadd.xlane.f32.xlu0 %v1101
      %v1165 = vpop.xlane.xlu0 %1164
      %1166 = vadd.xlane.f32.xlu0 %v1103
      %v1167 = vpop.xlane.xlu0 %1166
      %1168 = vadd.xlane.f32.xlu0 %v1105
      %v1169 = vpop.xlane.xlu0 %1168
      %1170 = vadd.xlane.f32.xlu0 %v1107
      %v1171 = vpop.xlane.xlu0 %1170
      %1172 = vadd.xlane.f32.xlu0 %v1109
      %v1173 = vpop.xlane.xlu0 %1172
      %1174 = vadd.xlane.f32.xlu0 %v1111
      %v1175 = vpop.xlane.xlu0 %1174
      %1176 = vadd.xlane.f32.xlu0 %v1113
      %v1177 = vpop.xlane.xlu0 %1176
      %1178 = vadd.xlane.f32.xlu0 %v1115
      %v1179 = vpop.xlane.xlu0 %1178
      %1180 = vadd.xlane.f32.xlu0 %v1117
      %v1181 = vpop.xlane.xlu0 %1180
      %1182 = vadd.xlane.f32.xlu0 %v1119
      %v1183 = vpop.xlane.xlu0 %1182
      %1184 = vadd.xlane.f32.xlu0 %v1121
      %v1185 = vpop.xlane.xlu0 %1184
      %1186 = vadd.xlane.f32.xlu0 %v1123
      %v1187 = vpop.xlane.xlu0 %1186
      %1188 = vadd.xlane.f32.xlu0 %v1125
      %v1189 = vpop.xlane.xlu0 %1188
      %v1190 = vrcp.pop %v1127
      %v1191 = vrcp.pop %v1129
      %v1192 = vrcp.pop %v1131
      %v1193 = vrcp.pop %v1133
      %v1194 = vrcp.pop %v1135
      %v1195 = vrcp.pop %v1137
      %v1196 = vrcp.pop %v1139
      %v1197 = vrcp.pop %v1141
      %v1198 = vrcp.pop %v1143
      %v1199 = vrcp.pop %v1145
      %v1200 = vrcp.pop %v1147
      %v1201 = vrcp.pop %v1149
      %v1202 = vrcp.pop %v1151
      %v1203 = vrcp.pop %v1153
      %v1204 = vrcp.pop %v1155
      %v1205 = vrcp.pop %v1157
      %v1206 = vrcp.pop %v1159
      %v1207 = vrcp.pop %v1161
      %v1208 = vrcp.pop %v1163
      %v1209 = vrcp.pop %v1165
      %v1210 = vrcp.pop %v1167
      %v1211 = vrcp.pop %v1169
      %v1212 = vrcp.pop %v1171
      %v1213 = vrcp.pop %v1173
      %v1214 = vrcp.pop %v1175
      %v1215 = vrcp.pop %v1177
      %v1216 = vrcp.pop %v1179
      %v1217 = vrcp.pop %v1181
      %v1218 = vrcp.pop %v1183
      %v1219 = vrcp.pop %v1185
      %v1220 = vrcp.pop %v1187
      %v1221 = vrcp.pop %v1189
      %v1222 = vmul.f32 %v1127, %v1190
      %v1223 = vmul.f32 %v1129, %v1191
      %v1224 = vmul.f32 %v1131, %v1192
      %v1225 = vmul.f32 %v1133, %v1193
      %v1226 = vmul.f32 %v1135, %v1194
      %v1227 = vmul.f32 %v1137, %v1195
      %v1228 = vmul.f32 %v1139, %v1196
      %v1229 = vmul.f32 %v1141, %v1197
      %v1230 = vmul.f32 %v1143, %v1198
      %v1231 = vmul.f32 %v1145, %v1199
      %v1232 = vmul.f32 %v1147, %v1200
      %v1233 = vmul.f32 %v1149, %v1201
      %v1234 = vmul.f32 %v1151, %v1202
      %v1235 = vmul.f32 %v1153, %v1203
      %v1236 = vmul.f32 %v1155, %v1204
      %v1237 = vmul.f32 %v1157, %v1205
      %v1238 = vmul.f32 %v1159, %v1206
      %v1239 = vmul.f32 %v1161, %v1207
      %v1240 = vmul.f32 %v1163, %v1208
      %v1241 = vmul.f32 %v1165, %v1209
      %v1242 = vmul.f32 %v1167, %v1210
      %v1243 = vmul.f32 %v1169, %v1211
      %v1244 = vmul.f32 %v1171, %v1212
      %v1245 = vmul.f32 %v1173, %v1213
      %v1246 = vmul.f32 %v1175, %v1214
      %v1247 = vmul.f32 %v1177, %v1215
      %v1248 = vmul.f32 %v1179, %v1216
      %v1249 = vmul.f32 %v1181, %v1217
      %v1250 = vmul.f32 %v1183, %v1218
      %v1251 = vmul.f32 %v1185, %v1219
      %v1252 = vmul.f32 %v1187, %v1220
      %v1253 = vmul.f32 %v1189, %v1221
      %v1254 = vsub.f32 2.0, %v1222
      %v1255 = vsub.f32 2.0, %v1223
      %v1256 = vsub.f32 2.0, %v1224
      %v1257 = vsub.f32 2.0, %v1225
      %v1258 = vsub.f32 2.0, %v1226
      %v1259 = vsub.f32 2.0, %v1227
      %v1260 = vsub.f32 2.0, %v1228
      %v1261 = vsub.f32 2.0, %v1229
      %v1262 = vsub.f32 2.0, %v1230
      %v1263 = vsub.f32 2.0, %v1231
      %v1264 = vsub.f32 2.0, %v1232
      %v1265 = vsub.f32 2.0, %v1233
      %v1266 = vsub.f32 2.0, %v1234
      %v1267 = vsub.f32 2.0, %v1235
      %v1268 = vsub.f32 2.0, %v1236
      %v1269 = vsub.f32 2.0, %v1237
      %v1270 = vsub.f32 2.0, %v1238
      %v1271 = vsub.f32 2.0, %v1239
      %v1272 = vsub.f32 2.0, %v1240
      %v1273 = vsub.f32 2.0, %v1241
      %v1274 = vsub.f32 2.0, %v1242
      %v1275 = vsub.f32 2.0, %v1243
      %v1276 = vsub.f32 2.0, %v1244
      %v1277 = vsub.f32 2.0, %v1245
      %v1278 = vsub.f32 2.0, %v1246
      %v1279 = vsub.f32 2.0, %v1247
      %v1280 = vsub.f32 2.0, %v1248
      %v1281 = vsub.f32 2.0, %v1249
      %v1282 = vsub.f32 2.0, %v1250
      %v1283 = vsub.f32 2.0, %v1251
      %v1284 = vsub.f32 2.0, %v1252
      %v1285 = vsub.f32 2.0, %v1253
      %v1286 = vmul.f32 %v1190, %v1254
      %v1287 = vmul.f32 %v1191, %v1255
      %v1288 = vmul.f32 %v1192, %v1256
      %v1289 = vmul.f32 %v1193, %v1257
      %v1290 = vmul.f32 %v1194, %v1258
      %v1291 = vmul.f32 %v1195, %v1259
      %v1292 = vmul.f32 %v1196, %v1260
      %v1293 = vmul.f32 %v1197, %v1261
      %v1294 = vmul.f32 %v1198, %v1262
      %v1295 = vmul.f32 %v1199, %v1263
      %v1296 = vmul.f32 %v1200, %v1264
      %v1297 = vmul.f32 %v1201, %v1265
      %v1298 = vmul.f32 %v1202, %v1266
      %v1299 = vmul.f32 %v1203, %v1267
      %v1300 = vmul.f32 %v1204, %v1268
      %v1301 = vmul.f32 %v1205, %v1269
      %v1302 = vmul.f32 %v1206, %v1270
      %v1303 = vmul.f32 %v1207, %v1271
      %v1304 = vmul.f32 %v1208, %v1272
      %v1305 = vmul.f32 %v1209, %v1273
      %v1306 = vmul.f32 %v1210, %v1274
      %v1307 = vmul.f32 %v1211, %v1275
      %v1308 = vmul.f32 %v1212, %v1276
      %v1309 = vmul.f32 %v1213, %v1277
      %v1310 = vmul.f32 %v1214, %v1278
      %v1311 = vmul.f32 %v1215, %v1279
      %v1312 = vmul.f32 %v1216, %v1280
      %v1313 = vmul.f32 %v1217, %v1281
      %v1314 = vmul.f32 %v1218, %v1282
      %v1315 = vmul.f32 %v1219, %v1283
      %v1316 = vmul.f32 %v1220, %v1284
      %v1317 = vmul.f32 %v1221, %v1285
      %v1318 = vmul.f32 %v1127, %v1286
      %v1319 = vmul.f32 %v1129, %v1287
      %v1320 = vmul.f32 %v1131, %v1288
      %v1321 = vmul.f32 %v1133, %v1289
      %v1322 = vmul.f32 %v1135, %v1290
      %v1323 = vmul.f32 %v1137, %v1291
      %v1324 = vmul.f32 %v1139, %v1292
      %v1325 = vmul.f32 %v1141, %v1293
      %v1326 = vmul.f32 %v1143, %v1294
      %v1327 = vmul.f32 %v1145, %v1295
      %v1328 = vmul.f32 %v1147, %v1296
      %v1329 = vmul.f32 %v1149, %v1297
      %v1330 = vmul.f32 %v1151, %v1298
      %v1331 = vmul.f32 %v1153, %v1299
      %v1332 = vmul.f32 %v1155, %v1300
      %v1333 = vmul.f32 %v1157, %v1301
      %v1334 = vmul.f32 %v1159, %v1302
      %v1335 = vmul.f32 %v1161, %v1303
      %v1336 = vmul.f32 %v1163, %v1304
      %v1337 = vmul.f32 %v1165, %v1305
      %v1338 = vmul.f32 %v1167, %v1306
      %v1339 = vmul.f32 %v1169, %v1307
      %v1340 = vmul.f32 %v1171, %v1308
      %v1341 = vmul.f32 %v1173, %v1309
      %v1342 = vmul.f32 %v1175, %v1310
      %v1343 = vmul.f32 %v1177, %v1311
      %v1344 = vmul.f32 %v1179, %v1312
      %v1345 = vmul.f32 %v1181, %v1313
      %v1346 = vmul.f32 %v1183, %v1314
      %v1347 = vmul.f32 %v1185, %v1315
      %v1348 = vmul.f32 %v1187, %v1316
      %v1349 = vmul.f32 %v1189, %v1317
      %v1350 = vsub.f32 2.0, %v1318
      %v1351 = vsub.f32 2.0, %v1319
      %v1352 = vsub.f32 2.0, %v1320
      %v1353 = vsub.f32 2.0, %v1321
      %v1354 = vsub.f32 2.0, %v1322
      %v1355 = vsub.f32 2.0, %v1323
      %v1356 = vsub.f32 2.0, %v1324
      %v1357 = vsub.f32 2.0, %v1325
      %v1358 = vsub.f32 2.0, %v1326
      %v1359 = vsub.f32 2.0, %v1327
      %v1360 = vsub.f32 2.0, %v1328
      %v1361 = vsub.f32 2.0, %v1329
      %v1362 = vsub.f32 2.0, %v1330
      %v1363 = vsub.f32 2.0, %v1331
      %v1364 = vsub.f32 2.0, %v1332
      %v1365 = vsub.f32 2.0, %v1333
      %v1366 = vsub.f32 2.0, %v1334
      %v1367 = vsub.f32 2.0, %v1335
      %v1368 = vsub.f32 2.0, %v1336
      %v1369 = vsub.f32 2.0, %v1337
      %v1370 = vsub.f32 2.0, %v1338
      %v1371 = vsub.f32 2.0, %v1339
      %v1372 = vsub.f32 2.0, %v1340
      %v1373 = vsub.f32 2.0, %v1341
      %v1374 = vsub.f32 2.0, %v1342
      %v1375 = vsub.f32 2.0, %v1343
      %v1376 = vsub.f32 2.0, %v1344
      %v1377 = vsub.f32 2.0, %v1345
      %v1378 = vsub.f32 2.0, %v1346
      %v1379 = vsub.f32 2.0, %v1347
      %v1380 = vsub.f32 2.0, %v1348
      %v1381 = vsub.f32 2.0, %v1349
      %v1382 = vmul.f32 %v1286, %v1350
      %v1383 = vmul.f32 %v1287, %v1351
      %v1384 = vmul.f32 %v1288, %v1352
      %v1385 = vmul.f32 %v1289, %v1353
      %v1386 = vmul.f32 %v1290, %v1354
      %v1387 = vmul.f32 %v1291, %v1355
      %v1388 = vmul.f32 %v1292, %v1356
      %v1389 = vmul.f32 %v1293, %v1357
      %v1390 = vmul.f32 %v1294, %v1358
      %v1391 = vmul.f32 %v1295, %v1359
      %v1392 = vmul.f32 %v1296, %v1360
      %v1393 = vmul.f32 %v1297, %v1361
      %v1394 = vmul.f32 %v1298, %v1362
      %v1395 = vmul.f32 %v1299, %v1363
      %v1396 = vmul.f32 %v1300, %v1364
      %v1397 = vmul.f32 %v1301, %v1365
      %v1398 = vmul.f32 %v1302, %v1366
      %v1399 = vmul.f32 %v1303, %v1367
      %v1400 = vmul.f32 %v1304, %v1368
      %v1401 = vmul.f32 %v1305, %v1369
      %v1402 = vmul.f32 %v1306, %v1370
      %v1403 = vmul.f32 %v1307, %v1371
      %v1404 = vmul.f32 %v1308, %v1372
      %v1405 = vmul.f32 %v1309, %v1373
      %v1406 = vmul.f32 %v1310, %v1374
      %v1407 = vmul.f32 %v1311, %v1375
      %v1408 = vmul.f32 %v1312, %v1376
      %v1409 = vmul.f32 %v1313, %v1377
      %v1410 = vmul.f32 %v1314, %v1378
      %v1411 = vmul.f32 %v1315, %v1379
      %v1412 = vmul.f32 %v1316, %v1380
      %v1413 = vmul.f32 %v1317, %v1381
      %v1414 = vmul.f32 %v1063, %v1382
      %v1415 = vmul.f32 %v1065, %v1383
      %v1416 = vmul.f32 %v1067, %v1384
      %v1417 = vmul.f32 %v1069, %v1385
      %v1418 = vmul.f32 %v1071, %v1386
      %v1419 = vmul.f32 %v1073, %v1387
      %v1420 = vmul.f32 %v1075, %v1388
      %v1421 = vmul.f32 %v1077, %v1389
      %v1422 = vmul.f32 %v1079, %v1390
      %v1423 = vmul.f32 %v1081, %v1391
      %v1424 = vmul.f32 %v1083, %v1392
      %v1425 = vmul.f32 %v1085, %v1393
      %v1426 = vmul.f32 %v1087, %v1394
      %v1427 = vmul.f32 %v1089, %v1395
      %v1428 = vmul.f32 %v1091, %v1396
      %v1429 = vmul.f32 %v1093, %v1397
      %v1430 = vmul.f32 %v1095, %v1398
      %v1431 = vmul.f32 %v1097, %v1399
      %v1432 = vmul.f32 %v1099, %v1400
      %v1433 = vmul.f32 %v1101, %v1401
      %v1434 = vmul.f32 %v1103, %v1402
      %v1435 = vmul.f32 %v1105, %v1403
      %v1436 = vmul.f32 %v1107, %v1404
      %v1437 = vmul.f32 %v1109, %v1405
      %v1438 = vmul.f32 %v1111, %v1406
      %v1439 = vmul.f32 %v1113, %v1407
      %v1440 = vmul.f32 %v1115, %v1408
      %v1441 = vmul.f32 %v1117, %v1409
      %v1442 = vmul.f32 %v1119, %v1410
      %v1443 = vmul.f32 %v1121, %v1411
      %v1444 = vmul.f32 %v1123, %v1412
      %v1445 = vmul.f32 %v1125, %v1413
      %v1446 = vld [vmem:[%s2] sm:$0xff]
      %v1447 = vld [vmem:[%s2 + $0x8] sm:$0xff]
      %v1448 = vld [vmem:[%s2 + $0x10] sm:$0xff]
      %v1449 = vld [vmem:[%s2 + $0x18] sm:$0xff]
      %v1450 = vld [vmem:[%s2 + $0x20] sm:$0xff]
      %v1451 = vld [vmem:[%s2 + $0x28] sm:$0xff]
      %v1452 = vld [vmem:[%s2 + $0x30] sm:$0xff]
      %v1453 = vld [vmem:[%s2 + $0x38] sm:$0xff]
      %v1454 = vld [vmem:[%s2 + $0x40] sm:$0xff]
      %v1455 = vld [vmem:[%s2 + $0x48] sm:$0xff]
      %v1456 = vld [vmem:[%s2 + $0x50] sm:$0xff]
      %v1457 = vld [vmem:[%s2 + $0x58] sm:$0xff]
      %v1458 = vld [vmem:[%s2 + $0x60] sm:$0xff]
      %v1459 = vld [vmem:[%s2 + $0x68] sm:$0xff]
      %v1460 = vld [vmem:[%s2 + $0x70] sm:$0xff]
      %v1461 = vld [vmem:[%s2 + $0x78] sm:$0xff]
      %1462 = vmatprep.subr.mxu0 0.0
      %1463 = vmatpush1.msra.mxu0 %v1446
      %1464 = vmatprep.subr.mxu0 0.0
      %1465 = vmatpush1.msra.mxu0 %v1447
      %1466 = vmatprep.subr.mxu0 0.0
      %1467 = vmatpush1.msra.mxu0 %v1448
      %1468 = vmatprep.subr.mxu0 0.0
      %1469 = vmatpush1.msra.mxu0 %v1449
      %1470 = vmatprep.subr.mxu0 0.0
      %1471 = vmatpush1.msra.mxu0 %v1450
      %1472 = vmatprep.subr.mxu0 0.0
      %1473 = vmatpush1.msra.mxu0 %v1451
      %1474 = vmatprep.subr.mxu0 0.0
      %1475 = vmatpush1.msra.mxu0 %v1452
      %1476 = vmatprep.subr.mxu0 0.0
      %1477 = vmatpush1.msra.mxu0 %v1453
      %1478 = vmatprep.subr.mxu0 0.0
      %1479 = vmatpush1.msra.mxu0 %v1454
      %1480 = vmatprep.subr.mxu0 0.0
      %1481 = vmatpush1.msra.mxu0 %v1455
      %1482 = vmatprep.subr.mxu0 0.0
      %1483 = vmatpush1.msra.mxu0 %v1456
      %1484 = vmatprep.subr.mxu0 0.0
      %1485 = vmatpush1.msra.mxu0 %v1457
      %1486 = vmatprep.subr.mxu0 0.0
      %1487 = vmatpush1.msra.mxu0 %v1458
      %1488 = vmatprep.subr.mxu0 0.0
      %1489 = vmatpush1.msra.mxu0 %v1459
      %1490 = vmatprep.subr.mxu0 0.0
      %1491 = vmatpush1.msra.mxu0 %v1460
      %1492 = vmatprep.subr.mxu0 0.0
      %1493 = vmatpush1.msra.mxu0 %v1461
      %1494 = vmatprep.subr.mxu0 0.0
      %1495 = vmatpush1.msra.mxu0 0.0
      %1496 = vmatprep.subr.mxu0 0.0
      %1497 = vmatpush1.msra.mxu0 0.0
      %1498 = vmatprep.subr.mxu0 0.0
      %1499 = vmatpush1.msra.mxu0 0.0
      %1500 = vmatprep.subr.mxu0 0.0
      %1501 = vmatpush1.msra.mxu0 0.0
      %1502 = vmatprep.subr.mxu0 0.0
      %1503 = vmatpush1.msra.mxu0 0.0
      %1504 = vmatprep.subr.mxu0 0.0
      %1505 = vmatpush1.msra.mxu0 0.0
      %1506 = vmatprep.subr.mxu0 0.0
      %1507 = vmatpush1.msra.mxu0 0.0
      %1508 = vmatprep.subr.mxu0 0.0
      %1509 = vmatpush1.msra.mxu0 0.0
      %1510 = vmatprep.subr.mxu0 0.0
      %1511 = vmatpush1.msra.mxu0 0.0
      %1512 = vmatprep.subr.mxu0 0.0
      %1513 = vmatpush1.msra.mxu0 0.0
      %1514 = vmatprep.subr.mxu0 0.0
      %1515 = vmatpush1.msra.mxu0 0.0
      %1516 = vmatprep.subr.mxu0 0.0
      %1517 = vmatpush1.msra.mxu0 0.0
      %1518 = vmatprep.subr.mxu0 0.0
      %1519 = vmatpush1.msra.mxu0 0.0
      %1520 = vmatprep.subr.mxu0 0.0
      %1521 = vmatpush1.msra.mxu0 0.0
      %1522 = vmatprep.subr.mxu0 0.0
      %1523 = vmatpush1.msra.mxu0 0.0
      %1524 = vmatprep.subr.mxu0 0.0
      %1525 = vmatpush1.msra.mxu0 0.0
      %1526 = vmatprep.mubr.f32.mxu0 0.0
      %1527 = vmatmul.mubr.f32.gmra.mrb[0].mxu0 %v1414
      %v1528 = vpop.f32.mrb[0].mxu0
      %v1529 = vadd.f32 0.0, %v1528
      %v1530 = vpop.f32.mrb[0].mxu0
      %1531 = vmatprep.mubr.f32.mxu0 0.0
      %1532 = vmatmul.mubr.f32.gmra.mrb[0].mxu0 %v1415
      %v1533 = vpop.f32.mrb[0].mxu0
      %v1534 = vadd.f32 0.0, %v1533
      %v1535 = vpop.f32.mrb[0].mxu0
      %1536 = vmatprep.mubr.f32.mxu0 0.0
      %1537 = vmatmul.mubr.f32.gmra.mrb[0].mxu0 %v1416
      %v1538 = vpop.f32.mrb[0].mxu0
      %v1539 = vadd.f32 0.0, %v1538
      %v1540 = vpop.f32.mrb[0].mxu0
      %1541 = vmatprep.mubr.f32.mxu0 0.0
      %1542 = vmatmul.mubr.f32.gmra.mrb[0].mxu0 %v1417
      %v1543 = vpop.f32.mrb[0].mxu0
      %v1544 = vadd.f32 0.0, %v1543
      %v1545 = vpop.f32.mrb[0].mxu0
      %1546 = vmatprep.mubr.f32.mxu0 0.0
      %1547 = vmatmul.mubr.f32.gmra.mrb[0].mxu0 %v1418
      %v1548 = vpop.f32.mrb[0].mxu0
      %v1549 = vadd.f32 0.0, %v1548
      %v1550 = vpop.f32.mrb[0].mxu0
      %1551 = vmatprep.mubr.f32.mxu0 0.0
      %1552 = vmatmul.mubr.f32.gmra.mrb[0].mxu0 %v1419
      %v1553 = vpop.f32.mrb[0].mxu0
      %v1554 = vadd.f32 0.0, %v1553
      %v1555 = vpop.f32.mrb[0].mxu0
      %1556 = vmatprep.mubr.f32.mxu0 0.0
      %1557 = vmatmul.mubr.f32.gmra.mrb[0].mxu0 %v1420
      %v1558 = vpop.f32.mrb[0].mxu0
      %v1559 = vadd.f32 0.0, %v1558
      %v1560 = vpop.f32.mrb[0].mxu0
      %1561 = vmatprep.mubr.f32.mxu0 0.0
      %1562 = vmatmul.mubr.f32.gmra.mrb[0].mxu0 %v1421
      %v1563 = vpop.f32.mrb[0].mxu0
      %v1564 = vadd.f32 0.0, %v1563
      %v1565 = vpop.f32.mrb[0].mxu0
      %1566 = vmatprep.mubr.f32.mxu0 0.0
      %1567 = vmatmul.mubr.f32.gmra.mrb[0].mxu0 %v1422
      %v1568 = vpop.f32.mrb[0].mxu0
      %v1569 = vadd.f32 0.0, %v1568
      %v1570 = vpop.f32.mrb[0].mxu0
      %1571 = vmatprep.mubr.f32.mxu0 0.0
      %1572 = vmatmul.mubr.f32.gmra.mrb[0].mxu0 %v1423
      %v1573 = vpop.f32.mrb[0].mxu0
      %v1574 = vadd.f32 0.0, %v1573
      %v1575 = vpop.f32.mrb[0].mxu0
      %1576 = vmatprep.mubr.f32.mxu0 0.0
      %1577 = vmatmul.mubr.f32.gmra.mrb[0].mxu0 %v1424
      %v1578 = vpop.f32.mrb[0].mxu0
      %v1579 = vadd.f32 0.0, %v1578
      %v1580 = vpop.f32.mrb[0].mxu0
      %1581 = vmatprep.mubr.f32.mxu0 0.0
      %1582 = vmatmul.mubr.f32.gmra.mrb[0].mxu0 %v1425
      %v1583 = vpop.f32.mrb[0].mxu0
      %v1584 = vadd.f32 0.0, %v1583
      %v1585 = vpop.f32.mrb[0].mxu0
      %1586 = vmatprep.mubr.f32.mxu0 0.0
      %1587 = vmatmul.mubr.f32.gmra.mrb[0].mxu0 %v1426
      %v1588 = vpop.f32.mrb[0].mxu0
      %v1589 = vadd.f32 0.0, %v1588
      %v1590 = vpop.f32.mrb[0].mxu0
      %1591 = vmatprep.mubr.f32.mxu0 0.0
      %1592 = vmatmul.mubr.f32.gmra.mrb[0].mxu0 %v1427
      %v1593 = vpop.f32.mrb[0].mxu0
      %v1594 = vadd.f32 0.0, %v1593
      %v1595 = vpop.f32.mrb[0].mxu0
      %1596 = vmatprep.mubr.f32.mxu0 0.0
      %1597 = vmatmul.mubr.f32.gmra.mrb[0].mxu0 %v1428
      %v1598 = vpop.f32.mrb[0].mxu0
      %v1599 = vadd.f32 0.0, %v1598
      %v1600 = vpop.f32.mrb[0].mxu0
      %1601 = vmatprep.mubr.f32.mxu0 0.0
      %1602 = vmatmul.mubr.f32.gmra.mrb[0].mxu0 %v1429
      %v1603 = vpop.f32.mrb[0].mxu0
      %v1604 = vadd.f32 0.0, %v1603
      %v1605 = vpop.f32.mrb[0].mxu0
      %1606 = vmatprep.mubr.f32.mxu0 0.0
      %1607 = vmatmul.mubr.f32.gmra.mrb[0].mxu0 %v1430
      %v1608 = vpop.f32.mrb[0].mxu0
      %v1609 = vadd.f32 0.0, %v1608
      %v1610 = vpop.f32.mrb[0].mxu0
      %1611 = vmatprep.mubr.f32.mxu0 0.0
      %1612 = vmatmul.mubr.f32.gmra.mrb[0].mxu0 %v1431
      %v1613 = vpop.f32.mrb[0].mxu0
      %v1614 = vadd.f32 0.0, %v1613
      %v1615 = vpop.f32.mrb[0].mxu0
      %1616 = vmatprep.mubr.f32.mxu0 0.0
      %1617 = vmatmul.mubr.f32.gmra.mrb[0].mxu0 %v1432
      %v1618 = vpop.f32.mrb[0].mxu0
      %v1619 = vadd.f32 0.0, %v1618
      %v1620 = vpop.f32.mrb[0].mxu0
      %1621 = vmatprep.mubr.f32.mxu0 0.0
      %1622 = vmatmul.mubr.f32.gmra.mrb[0].mxu0 %v1433
      %v1623 = vpop.f32.mrb[0].mxu0
      %v1624 = vadd.f32 0.0, %v1623
      %v1625 = vpop.f32.mrb[0].mxu0
      %1626 = vmatprep.mubr.f32.mxu0 0.0
      %1627 = vmatmul.mubr.f32.gmra.mrb[0].mxu0 %v1434
      %v1628 = vpop.f32.mrb[0].mxu0
      %v1629 = vadd.f32 0.0, %v1628
      %v1630 = vpop.f32.mrb[0].mxu0
      %1631 = vmatprep.mubr.f32.mxu0 0.0
      %1632 = vmatmul.mubr.f32.gmra.mrb[0].mxu0 %v1435
      %v1633 = vpop.f32.mrb[0].mxu0
      %v1634 = vadd.f32 0.0, %v1633
      %v1635 = vpop.f32.mrb[0].mxu0
      %1636 = vmatprep.mubr.f32.mxu0 0.0
      %1637 = vmatmul.mubr.f32.gmra.mrb[0].mxu0 %v1436
      %v1638 = vpop.f32.mrb[0].mxu0
      %v1639 = vadd.f32 0.0, %v1638
      %v1640 = vpop.f32.mrb[0].mxu0
      %1641 = vmatprep.mubr.f32.mxu0 0.0
      %1642 = vmatmul.mubr.f32.gmra.mrb[0].mxu0 %v1437
      %v1643 = vpop.f32.mrb[0].mxu0
      %v1644 = vadd.f32 0.0, %v1643
      %v1645 = vpop.f32.mrb[0].mxu0
      %1646 = vmatprep.mubr.f32.mxu0 0.0
      %1647 = vmatmul.mubr.f32.gmra.mrb[0].mxu0 %v1438
      %v1648 = vpop.f32.mrb[0].mxu0
      %v1649 = vadd.f32 0.0, %v1648
      %v1650 = vpop.f32.mrb[0].mxu0
      %1651 = vmatprep.mubr.f32.mxu0 0.0
      %1652 = vmatmul.mubr.f32.gmra.mrb[0].mxu0 %v1439
      %v1653 = vpop.f32.mrb[0].mxu0
      %v1654 = vadd.f32 0.0, %v1653
      %v1655 = vpop.f32.mrb[0].mxu0
      %1656 = vmatprep.mubr.f32.mxu0 0.0
      %1657 = vmatmul.mubr.f32.gmra.mrb[0].mxu0 %v1440
      %v1658 = vpop.f32.mrb[0].mxu0
      %v1659 = vadd.f32 0.0, %v1658
      %v1660 = vpop.f32.mrb[0].mxu0
      %1661 = vmatprep.mubr.f32.mxu0 0.0
      %1662 = vmatmul.mubr.f32.gmra.mrb[0].mxu0 %v1441
      %v1663 = vpop.f32.mrb[0].mxu0
      %v1664 = vadd.f32 0.0, %v1663
      %v1665 = vpop.f32.mrb[0].mxu0
      %1666 = vmatprep.mubr.f32.mxu0 0.0
      %1667 = vmatmul.mubr.f32.gmra.mrb[0].mxu0 %v1442
      %v1668 = vpop.f32.mrb[0].mxu0
      %v1669 = vadd.f32 0.0, %v1668
      %v1670 = vpop.f32.mrb[0].mxu0
      %1671 = vmatprep.mubr.f32.mxu0 0.0
      %1672 = vmatmul.mubr.f32.gmra.mrb[0].mxu0 %v1443
      %v1673 = vpop.f32.mrb[0].mxu0
      %v1674 = vadd.f32 0.0, %v1673
      %v1675 = vpop.f32.mrb[0].mxu0
      %1676 = vmatprep.mubr.f32.mxu0 0.0
      %1677 = vmatmul.mubr.f32.gmra.mrb[0].mxu0 %v1444
      %v1678 = vpop.f32.mrb[0].mxu0
      %v1679 = vadd.f32 0.0, %v1678
      %v1680 = vpop.f32.mrb[0].mxu0
      %1681 = vmatprep.mubr.f32.mxu0 0.0
      %1682 = vmatmul.mubr.f32.gmra.mrb[0].mxu0 %v1445
      %v1683 = vpop.f32.mrb[0].mxu0
      %v1684 = vadd.f32 0.0, %v1683
      %v1685 = vpop.f32.mrb[0].mxu0
      %1686 = vdwg.mxu0
      %v1687 = vadd.f32 %v465, %v1529
      %v1688 = vadd.f32 %v471, %v1534
      %v1689 = vadd.f32 %v477, %v1539
      %v1690 = vadd.f32 %v483, %v1544
      %v1691 = vadd.f32 %v489, %v1549
      %v1692 = vadd.f32 %v495, %v1554
      %v1693 = vadd.f32 %v501, %v1559
      %v1694 = vadd.f32 %v507, %v1564
      %v1695 = vadd.f32 %v513, %v1569
      %v1696 = vadd.f32 %v519, %v1574
      %v1697 = vadd.f32 %v525, %v1579
      %v1698 = vadd.f32 %v531, %v1584
      %v1699 = vadd.f32 %v537, %v1589
      %v1700 = vadd.f32 %v543, %v1594
      %v1701 = vadd.f32 %v549, %v1599
      %v1702 = vadd.f32 %v555, %v1604
      %v1703 = vadd.f32 %v561, %v1609
      %v1704 = vadd.f32 %v567, %v1614
      %v1705 = vadd.f32 %v573, %v1619
      %v1706 = vadd.f32 %v579, %v1624
      %v1707 = vadd.f32 %v585, %v1629
      %v1708 = vadd.f32 %v591, %v1634
      %v1709 = vadd.f32 %v597, %v1639
      %v1710 = vadd.f32 %v603, %v1644
      %v1711 = vadd.f32 %v609, %v1649
      %v1712 = vadd.f32 %v615, %v1654
      %v1713 = vadd.f32 %v621, %v1659
      %v1714 = vadd.f32 %v627, %v1664
      %v1715 = vadd.f32 %v633, %v1669
      %v1716 = vadd.f32 %v639, %v1674
      %v1717 = vadd.f32 %v645, %v1679
      %v1718 = vadd.f32 %v651, %v1684
      %v1719 = vlaneseq
      %v1720 = vshrl.u32 %v1719, 7
      %v1721 = vsub.s32 1, %v1720
      %v1722 = vrot.slane %v287, %v1721
      %v1723 = vadd.f32 %v1687, %v1722
      %v1724 = vadd.f32 %v1688, %v1722
      %v1725 = vadd.f32 %v1689, %v1722
      %v1726 = vadd.f32 %v1690, %v1722
      %v1727 = vadd.f32 %v1691, %v1722
      %v1728 = vadd.f32 %v1692, %v1722
      %v1729 = vadd.f32 %v1693, %v1722
      %v1730 = vadd.f32 %v1694, %v1722
      %v1731 = vadd.f32 %v1695, %v1722
      %v1732 = vadd.f32 %v1696, %v1722
      %v1733 = vadd.f32 %v1697, %v1722
      %v1734 = vadd.f32 %v1698, %v1722
      %v1735 = vadd.f32 %v1699, %v1722
      %v1736 = vadd.f32 %v1700, %v1722
      %v1737 = vadd.f32 %v1701, %v1722
      %v1738 = vadd.f32 %v1702, %v1722
      %v1739 = vadd.f32 %v1703, %v1722
      %v1740 = vadd.f32 %v1704, %v1722
      %v1741 = vadd.f32 %v1705, %v1722
      %v1742 = vadd.f32 %v1706, %v1722
      %v1743 = vadd.f32 %v1707, %v1722
      %v1744 = vadd.f32 %v1708, %v1722
      %v1745 = vadd.f32 %v1709, %v1722
      %v1746 = vadd.f32 %v1710, %v1722
      %v1747 = vadd.f32 %v1711, %v1722
      %v1748 = vadd.f32 %v1712, %v1722
      %v1749 = vadd.f32 %v1713, %v1722
      %v1750 = vadd.f32 %v1714, %v1722
      %v1751 = vadd.f32 %v1715, %v1722
      %v1752 = vadd.f32 %v1716, %v1722
      %v1753 = vadd.f32 %v1717, %v1722
      %v1754 = vadd.f32 %v1718, %v1722
      %v1755 = vmax.f32 %v1723, 0.0
      %v1756 = vmax.f32 %v1724, 0.0
      %v1757 = vmax.f32 %v1725, 0.0
      %v1758 = vmax.f32 %v1726, 0.0
      %v1759 = vmax.f32 %v1727, 0.0
      %v1760 = vmax.f32 %v1728, 0.0
      %v1761 = vmax.f32 %v1729, 0.0
      %v1762 = vmax.f32 %v1730, 0.0
      %v1763 = vmax.f32 %v1731, 0.0
      %v1764 = vmax.f32 %v1732, 0.0
      %v1765 = vmax.f32 %v1733, 0.0
      %v1766 = vmax.f32 %v1734, 0.0
      %v1767 = vmax.f32 %v1735, 0.0
      %v1768 = vmax.f32 %v1736, 0.0
      %v1769 = vmax.f32 %v1737, 0.0
      %v1770 = vmax.f32 %v1738, 0.0
      %v1771 = vmax.f32 %v1739, 0.0
      %v1772 = vmax.f32 %v1740, 0.0
      %v1773 = vmax.f32 %v1741, 0.0
      %v1774 = vmax.f32 %v1742, 0.0
      %v1775 = vmax.f32 %v1743, 0.0
      %v1776 = vmax.f32 %v1744, 0.0
      %v1777 = vmax.f32 %v1745, 0.0
      %v1778 = vmax.f32 %v1746, 0.0
      %v1779 = vmax.f32 %v1747, 0.0
      %v1780 = vmax.f32 %v1748, 0.0
      %v1781 = vmax.f32 %v1749, 0.0
      %v1782 = vmax.f32 %v1750, 0.0
      %v1783 = vmax.f32 %v1751, 0.0
      %v1784 = vmax.f32 %v1752, 0.0
      %v1785 = vmax.f32 %v1753, 0.0
      %v1786 = vmax.f32 %v1754, 0.0
      %v1787 = vld [vmem:[%s4] sm:$0xff]
      %v1788 = vld [vmem:[%s4 + $0x8] sm:$0xff]
      %v1789 = vld [vmem:[%s4 + $0x10] sm:$0xff]
      %v1790 = vld [vmem:[%s4 + $0x18] sm:$0xff]
      %v1791 = vld [vmem:[%s4 + $0x20] sm:$0xff]
      %v1792 = vld [vmem:[%s4 + $0x28] sm:$0xff]
      %v1793 = vld [vmem:[%s4 + $0x30] sm:$0xff]
      %v1794 = vld [vmem:[%s4 + $0x38] sm:$0xff]
      %v1795 = vld [vmem:[%s4 + $0x40] sm:$0xff]
      %v1796 = vld [vmem:[%s4 + $0x48] sm:$0xff]
      %v1797 = vld [vmem:[%s4 + $0x50] sm:$0xff]
      %v1798 = vld [vmem:[%s4 + $0x58] sm:$0xff]
      %v1799 = vld [vmem:[%s4 + $0x60] sm:$0xff]
      %v1800 = vld [vmem:[%s4 + $0x68] sm:$0xff]
      %v1801 = vld [vmem:[%s4 + $0x70] sm:$0xff]
      %v1802 = vld [vmem:[%s4 + $0x78] sm:$0xff]
      %v1803 = vlaneseq
      %v1804 = vshrl.u32 %v1803, 7
      %v1805 = vsub.s32 3, %v1804
      %v1806 = vrot.slane %v287, %v1805
      %1807 = vmatprep.subr.mxu0 0.0
      %1808 = vmatpush1.msra.mxu0 %v1787
      %1809 = vmatprep.subr.mxu0 0.0
      %1810 = vmatpush1.msra.mxu0 %v1788
      %1811 = vmatprep.subr.mxu0 0.0
      %1812 = vmatpush1.msra.mxu0 %v1789
      %1813 = vmatprep.subr.mxu0 0.0
      %1814 = vmatpush1.msra.mxu0 %v1790
      %1815 = vmatprep.subr.mxu0 0.0
      %1816 = vmatpush1.msra.mxu0 %v1791
      %1817 = vmatprep.subr.mxu0 0.0
      %1818 = vmatpush1.msra.mxu0 %v1792
      %1819 = vmatprep.subr.mxu0 0.0
      %1820 = vmatpush1.msra.mxu0 %v1793
      %1821 = vmatprep.subr.mxu0 0.0
      %1822 = vmatpush1.msra.mxu0 %v1794
      %1823 = vmatprep.subr.mxu0 0.0
      %1824 = vmatpush1.msra.mxu0 %v1795
      %1825 = vmatprep.subr.mxu0 0.0
      %1826 = vmatpush1.msra.mxu0 %v1796
      %1827 = vmatprep.subr.mxu0 0.0
      %1828 = vmatpush1.msra.mxu0 %v1797
      %1829 = vmatprep.subr.mxu0 0.0
      %1830 = vmatpush1.msra.mxu0 %v1798
      %1831 = vmatprep.subr.mxu0 0.0
      %1832 = vmatpush1.msra.mxu0 %v1799
      %1833 = vmatprep.subr.mxu0 0.0
      %1834 = vmatpush1.msra.mxu0 %v1800
      %1835 = vmatprep.subr.mxu0 0.0
      %1836 = vmatpush1.msra.mxu0 %v1801
      %1837 = vmatprep.subr.mxu0 0.0
      %1838 = vmatpush1.msra.mxu0 %v1802
      %1839 = vmatprep.subr.mxu0 0.0
      %1840 = vmatpush1.msra.mxu0 0.0
      %1841 = vmatprep.subr.mxu0 0.0
      %1842 = vmatpush1.msra.mxu0 0.0
      %1843 = vmatprep.subr.mxu0 0.0
      %1844 = vmatpush1.msra.mxu0 0.0
      %1845 = vmatprep.subr.mxu0 0.0
      %1846 = vmatpush1.msra.mxu0 0.0
      %1847 = vmatprep.subr.mxu0 0.0
      %1848 = vmatpush1.msra.mxu0 0.0
      %1849 = vmatprep.subr.mxu0 0.0
      %1850 = vmatpush1.msra.mxu0 0.0
      %1851 = vmatprep.subr.mxu0 0.0
      %1852 = vmatpush1.msra.mxu0 0.0
      %1853 = vmatprep.subr.mxu0 0.0
      %1854 = vmatpush1.msra.mxu0 0.0
      %1855 = vmatprep.subr.mxu0 0.0
      %1856 = vmatpush1.msra.mxu0 0.0
      %1857 = vmatprep.subr.mxu0 0.0
      %1858 = vmatpush1.msra.mxu0 0.0
      %1859 = vmatprep.subr.mxu0 0.0
      %1860 = vmatpush1.msra.mxu0 0.0
      %1861 = vmatprep.subr.mxu0 0.0
      %1862 = vmatpush1.msra.mxu0 0.0
      %1863 = vmatprep.subr.mxu0 0.0
      %1864 = vmatpush1.msra.mxu0 0.0
      %1865 = vmatprep.subr.mxu0 0.0
      %1866 = vmatpush1.msra.mxu0 0.0
      %1867 = vmatprep.subr.mxu0 0.0
      %1868 = vmatpush1.msra.mxu0 0.0
      %1869 = vmatprep.subr.mxu0 0.0
      %1870 = vmatpush1.msra.mxu0 0.0
      %1871 = vmatprep.mubr.f32.mxu0 0.0
      %1872 = vmatmul.mubr.f32.gmra.mrb[0].mxu0 %v1755
      %v1873 = vpop.f32.mrb[0].mxu0
      %v1874 = vadd.f32 %v1806, %v1873
      %v1875 = vpop.f32.mrb[0].mxu0
      %1876 = vmatprep.mubr.f32.mxu0 0.0
      %1877 = vmatmul.mubr.f32.gmra.mrb[0].mxu0 %v1756
      %v1878 = vpop.f32.mrb[0].mxu0
      %v1879 = vadd.f32 %v1806, %v1878
      %v1880 = vpop.f32.mrb[0].mxu0
      %1881 = vmatprep.mubr.f32.mxu0 0.0
      %1882 = vmatmul.mubr.f32.gmra.mrb[0].mxu0 %v1757
      %v1883 = vpop.f32.mrb[0].mxu0
      %v1884 = vadd.f32 %v1806, %v1883
      %v1885 = vpop.f32.mrb[0].mxu0
      %1886 = vmatprep.mubr.f32.mxu0 0.0
      %1887 = vmatmul.mubr.f32.gmra.mrb[0].mxu0 %v1758
      %v1888 = vpop.f32.mrb[0].mxu0
      %v1889 = vadd.f32 %v1806, %v1888
      %v1890 = vpop.f32.mrb[0].mxu0
      %1891 = vmatprep.mubr.f32.mxu0 0.0
      %1892 = vmatmul.mubr.f32.gmra.mrb[0].mxu0 %v1759
      %v1893 = vpop.f32.mrb[0].mxu0
      %v1894 = vadd.f32 %v1806, %v1893
      %v1895 = vpop.f32.mrb[0].mxu0
      %1896 = vmatprep.mubr.f32.mxu0 0.0
      %1897 = vmatmul.mubr.f32.gmra.mrb[0].mxu0 %v1760
      %v1898 = vpop.f32.mrb[0].mxu0
      %v1899 = vadd.f32 %v1806, %v1898
      %v1900 = vpop.f32.mrb[0].mxu0
      %1901 = vmatprep.mubr.f32.mxu0 0.0
      %1902 = vmatmul.mubr.f32.gmra.mrb[0].mxu0 %v1761
      %v1903 = vpop.f32.mrb[0].mxu0
      %v1904 = vadd.f32 %v1806, %v1903
      %v1905 = vpop.f32.mrb[0].mxu0
      %1906 = vmatprep.mubr.f32.mxu0 0.0
      %1907 = vmatmul.mubr.f32.gmra.mrb[0].mxu0 %v1762
      %v1908 = vpop.f32.mrb[0].mxu0
      %v1909 = vadd.f32 %v1806, %v1908
      %v1910 = vpop.f32.mrb[0].mxu0
      %1911 = vmatprep.mubr.f32.mxu0 0.0
      %1912 = vmatmul.mubr.f32.gmra.mrb[0].mxu0 %v1763
      %v1913 = vpop.f32.mrb[0].mxu0
      %v1914 = vadd.f32 %v1806, %v1913
      %v1915 = vpop.f32.mrb[0].mxu0
      %1916 = vmatprep.mubr.f32.mxu0 0.0
      %1917 = vmatmul.mubr.f32.gmra.mrb[0].mxu0 %v1764
      %v1918 = vpop.f32.mrb[0].mxu0
      %v1919 = vadd.f32 %v1806, %v1918
      %v1920 = vpop.f32.mrb[0].mxu0
      %1921 = vmatprep.mubr.f32.mxu0 0.0
      %1922 = vmatmul.mubr.f32.gmra.mrb[0].mxu0 %v1765
      %v1923 = vpop.f32.mrb[0].mxu0
      %v1924 = vadd.f32 %v1806, %v1923
      %v1925 = vpop.f32.mrb[0].mxu0
      %1926 = vmatprep.mubr.f32.mxu0 0.0
      %1927 = vmatmul.mubr.f32.gmra.mrb[0].mxu0 %v1766
      %v1928 = vpop.f32.mrb[0].mxu0
      %v1929 = vadd.f32 %v1806, %v1928
      %v1930 = vpop.f32.mrb[0].mxu0
      %1931 = vmatprep.mubr.f32.mxu0 0.0
      %1932 = vmatmul.mubr.f32.gmra.mrb[0].mxu0 %v1767
      %v1933 = vpop.f32.mrb[0].mxu0
      %v1934 = vadd.f32 %v1806, %v1933
      %v1935 = vpop.f32.mrb[0].mxu0
      %1936 = vmatprep.mubr.f32.mxu0 0.0
      %1937 = vmatmul.mubr.f32.gmra.mrb[0].mxu0 %v1768
      %v1938 = vpop.f32.mrb[0].mxu0
      %v1939 = vadd.f32 %v1806, %v1938
      %v1940 = vpop.f32.mrb[0].mxu0
      %1941 = vmatprep.mubr.f32.mxu0 0.0
      %1942 = vmatmul.mubr.f32.gmra.mrb[0].mxu0 %v1769
      %v1943 = vpop.f32.mrb[0].mxu0
      %v1944 = vadd.f32 %v1806, %v1943
      %v1945 = vpop.f32.mrb[0].mxu0
      %1946 = vmatprep.mubr.f32.mxu0 0.0
      %1947 = vmatmul.mubr.f32.gmra.mrb[0].mxu0 %v1770
      %v1948 = vpop.f32.mrb[0].mxu0
      %v1949 = vadd.f32 %v1806, %v1948
      %v1950 = vpop.f32.mrb[0].mxu0
      %1951 = vmatprep.mubr.f32.mxu0 0.0
      %1952 = vmatmul.mubr.f32.gmra.mrb[0].mxu0 %v1771
      %v1953 = vpop.f32.mrb[0].mxu0
      %v1954 = vadd.f32 %v1806, %v1953
      %v1955 = vpop.f32.mrb[0].mxu0
      %1956 = vmatprep.mubr.f32.mxu0 0.0
      %1957 = vmatmul.mubr.f32.gmra.mrb[0].mxu0 %v1772
      %v1958 = vpop.f32.mrb[0].mxu0
      %v1959 = vadd.f32 %v1806, %v1958
      %v1960 = vpop.f32.mrb[0].mxu0
      %1961 = vmatprep.mubr.f32.mxu0 0.0
      %1962 = vmatmul.mubr.f32.gmra.mrb[0].mxu0 %v1773
      %v1963 = vpop.f32.mrb[0].mxu0
      %v1964 = vadd.f32 %v1806, %v1963
      %v1965 = vpop.f32.mrb[0].mxu0
      %1966 = vmatprep.mubr.f32.mxu0 0.0
      %1967 = vmatmul.mubr.f32.gmra.mrb[0].mxu0 %v1774
      %v1968 = vpop.f32.mrb[0].mxu0
      %v1969 = vadd.f32 %v1806, %v1968
      %v1970 = vpop.f32.mrb[0].mxu0
      %1971 = vmatprep.mubr.f32.mxu0 0.0
      %1972 = vmatmul.mubr.f32.gmra.mrb[0].mxu0 %v1775
      %v1973 = vpop.f32.mrb[0].mxu0
      %v1974 = vadd.f32 %v1806, %v1973
      %v1975 = vpop.f32.mrb[0].mxu0
      %1976 = vmatprep.mubr.f32.mxu0 0.0
      %1977 = vmatmul.mubr.f32.gmra.mrb[0].mxu0 %v1776
      %v1978 = vpop.f32.mrb[0].mxu0
      %v1979 = vadd.f32 %v1806, %v1978
      %v1980 = vpop.f32.mrb[0].mxu0
      %1981 = vmatprep.mubr.f32.mxu0 0.0
      %1982 = vmatmul.mubr.f32.gmra.mrb[0].mxu0 %v1777
      %v1983 = vpop.f32.mrb[0].mxu0
      %v1984 = vadd.f32 %v1806, %v1983
      %v1985 = vpop.f32.mrb[0].mxu0
      %1986 = vmatprep.mubr.f32.mxu0 0.0
      %1987 = vmatmul.mubr.f32.gmra.mrb[0].mxu0 %v1778
      %v1988 = vpop.f32.mrb[0].mxu0
      %v1989 = vadd.f32 %v1806, %v1988
      %v1990 = vpop.f32.mrb[0].mxu0
      %1991 = vmatprep.mubr.f32.mxu0 0.0
      %1992 = vmatmul.mubr.f32.gmra.mrb[0].mxu0 %v1779
      %v1993 = vpop.f32.mrb[0].mxu0
      %v1994 = vadd.f32 %v1806, %v1993
      %v1995 = vpop.f32.mrb[0].mxu0
      %1996 = vmatprep.mubr.f32.mxu0 0.0
      %1997 = vmatmul.mubr.f32.gmra.mrb[0].mxu0 %v1780
      %v1998 = vpop.f32.mrb[0].mxu0
      %v1999 = vadd.f32 %v1806, %v1998
      %v2000 = vpop.f32.mrb[0].mxu0
      %2001 = vmatprep.mubr.f32.mxu0 0.0
      %2002 = vmatmul.mubr.f32.gmra.mrb[0].mxu0 %v1781
      %v2003 = vpop.f32.mrb[0].mxu0
      %v2004 = vadd.f32 %v1806, %v2003
      %v2005 = vpop.f32.mrb[0].mxu0
      %2006 = vmatprep.mubr.f32.mxu0 0.0
      %2007 = vmatmul.mubr.f32.gmra.mrb[0].mxu0 %v1782
      %v2008 = vpop.f32.mrb[0].mxu0
      %v2009 = vadd.f32 %v1806, %v2008
      %v2010 = vpop.f32.mrb[0].mxu0
      %2011 = vmatprep.mubr.f32.mxu0 0.0
      %2012 = vmatmul.mubr.f32.gmra.mrb[0].mxu0 %v1783
      %v2013 = vpop.f32.mrb[0].mxu0
      %v2014 = vadd.f32 %v1806, %v2013
      %v2015 = vpop.f32.mrb[0].mxu0
      %2016 = vmatprep.mubr.f32.mxu0 0.0
      %2017 = vmatmul.mubr.f32.gmra.mrb[0].mxu0 %v1784
      %v2018 = vpop.f32.mrb[0].mxu0
      %v2019 = vadd.f32 %v1806, %v2018
      %v2020 = vpop.f32.mrb[0].mxu0
      %2021 = vmatprep.mubr.f32.mxu0 0.0
      %2022 = vmatmul.mubr.f32.gmra.mrb[0].mxu0 %v1785
      %v2023 = vpop.f32.mrb[0].mxu0
      %v2024 = vadd.f32 %v1806, %v2023
      %v2025 = vpop.f32.mrb[0].mxu0
      %2026 = vmatprep.mubr.f32.mxu0 0.0
      %2027 = vmatmul.mubr.f32.gmra.mrb[0].mxu0 %v1786
      %v2028 = vpop.f32.mrb[0].mxu0
      %v2029 = vadd.f32 %v1806, %v2028
      %v2030 = vpop.f32.mrb[0].mxu0
      %2031 = vdwg.mxu0
      %v2032 = vlaneseq
      %v2033 = vshrl.u32 %v2032, 7
      %v2034 = vsub.s32 5, %v2033
      %v2035 = vrot.slane %v287, %v2034
      %v2036 = vadd.f32 %v1414, %v2035
      %v2037 = vadd.f32 %v1415, %v2035
      %v2038 = vadd.f32 %v1416, %v2035
      %v2039 = vadd.f32 %v1417, %v2035
      %v2040 = vadd.f32 %v1418, %v2035
      %v2041 = vadd.f32 %v1419, %v2035
      %v2042 = vadd.f32 %v1420, %v2035
      %v2043 = vadd.f32 %v1421, %v2035
      %v2044 = vadd.f32 %v1422, %v2035
      %v2045 = vadd.f32 %v1423, %v2035
      %v2046 = vadd.f32 %v1424, %v2035
      %v2047 = vadd.f32 %v1425, %v2035
      %v2048 = vadd.f32 %v1426, %v2035
      %v2049 = vadd.f32 %v1427, %v2035
      %v2050 = vadd.f32 %v1428, %v2035
      %v2051 = vadd.f32 %v1429, %v2035
      %v2052 = vadd.f32 %v1430, %v2035
      %v2053 = vadd.f32 %v1431, %v2035
      %v2054 = vadd.f32 %v1432, %v2035
      %v2055 = vadd.f32 %v1433, %v2035
      %v2056 = vadd.f32 %v1434, %v2035
      %v2057 = vadd.f32 %v1435, %v2035
      %v2058 = vadd.f32 %v1436, %v2035
      %v2059 = vadd.f32 %v1437, %v2035
      %v2060 = vadd.f32 %v1438, %v2035
      %v2061 = vadd.f32 %v1439, %v2035
      %v2062 = vadd.f32 %v1440, %v2035
      %v2063 = vadd.f32 %v1441, %v2035
      %v2064 = vadd.f32 %v1442, %v2035
      %v2065 = vadd.f32 %v1443, %v2035
      %v2066 = vadd.f32 %v1444, %v2035
      %v2067 = vadd.f32 %v1445, %v2035
      %v2068 = vrcp.pop %v2036
      %v2069 = vrcp.pop %v2037
      %v2070 = vrcp.pop %v2038
      %v2071 = vrcp.pop %v2039
      %v2072 = vrcp.pop %v2040
      %v2073 = vrcp.pop %v2041
      %v2074 = vrcp.pop %v2042
      %v2075 = vrcp.pop %v2043
      %v2076 = vrcp.pop %v2044
      %v2077 = vrcp.pop %v2045
      %v2078 = vrcp.pop %v2046
      %v2079 = vrcp.pop %v2047
      %v2080 = vrcp.pop %v2048
      %v2081 = vrcp.pop %v2049
      %v2082 = vrcp.pop %v2050
      %v2083 = vrcp.pop %v2051
      %v2084 = vrcp.pop %v2052
      %v2085 = vrcp.pop %v2053
      %v2086 = vrcp.pop %v2054
      %v2087 = vrcp.pop %v2055
      %v2088 = vrcp.pop %v2056
      %v2089 = vrcp.pop %v2057
      %v2090 = vrcp.pop %v2058
      %v2091 = vrcp.pop %v2059
      %v2092 = vrcp.pop %v2060
      %v2093 = vrcp.pop %v2061
      %v2094 = vrcp.pop %v2062
      %v2095 = vrcp.pop %v2063
      %v2096 = vrcp.pop %v2064
      %v2097 = vrcp.pop %v2065
      %v2098 = vrcp.pop %v2066
      %v2099 = vrcp.pop %v2067
      %v2100 = vmul.f32 %v2036, %v2068
      %v2101 = vmul.f32 %v2037, %v2069
      %v2102 = vmul.f32 %v2038, %v2070
      %v2103 = vmul.f32 %v2039, %v2071
      %v2104 = vmul.f32 %v2040, %v2072
      %v2105 = vmul.f32 %v2041, %v2073
      %v2106 = vmul.f32 %v2042, %v2074
      %v2107 = vmul.f32 %v2043, %v2075
      %v2108 = vmul.f32 %v2044, %v2076
      %v2109 = vmul.f32 %v2045, %v2077
      %v2110 = vmul.f32 %v2046, %v2078
      %v2111 = vmul.f32 %v2047, %v2079
      %v2112 = vmul.f32 %v2048, %v2080
      %v2113 = vmul.f32 %v2049, %v2081
      %v2114 = vmul.f32 %v2050, %v2082
      %v2115 = vmul.f32 %v2051, %v2083
      %v2116 = vmul.f32 %v2052, %v2084
      %v2117 = vmul.f32 %v2053, %v2085
      %v2118 = vmul.f32 %v2054, %v2086
      %v2119 = vmul.f32 %v2055, %v2087
      %v2120 = vmul.f32 %v2056, %v2088
      %v2121 = vmul.f32 %v2057, %v2089
      %v2122 = vmul.f32 %v2058, %v2090
      %v2123 = vmul.f32 %v2059, %v2091
      %v2124 = vmul.f32 %v2060, %v2092
      %v2125 = vmul.f32 %v2061, %v2093
      %v2126 = vmul.f32 %v2062, %v2094
      %v2127 = vmul.f32 %v2063, %v2095
      %v2128 = vmul.f32 %v2064, %v2096
      %v2129 = vmul.f32 %v2065, %v2097
      %v2130 = vmul.f32 %v2066, %v2098
      %v2131 = vmul.f32 %v2067, %v2099
      %v2132 = vsub.f32 2.0, %v2100
      %v2133 = vsub.f32 2.0, %v2101
      %v2134 = vsub.f32 2.0, %v2102
      %v2135 = vsub.f32 2.0, %v2103
      %v2136 = vsub.f32 2.0, %v2104
      %v2137 = vsub.f32 2.0, %v2105
      %v2138 = vsub.f32 2.0, %v2106
      %v2139 = vsub.f32 2.0, %v2107
      %v2140 = vsub.f32 2.0, %v2108
      %v2141 = vsub.f32 2.0, %v2109
      %v2142 = vsub.f32 2.0, %v2110
      %v2143 = vsub.f32 2.0, %v2111
      %v2144 = vsub.f32 2.0, %v2112
      %v2145 = vsub.f32 2.0, %v2113
      %v2146 = vsub.f32 2.0, %v2114
      %v2147 = vsub.f32 2.0, %v2115
      %v2148 = vsub.f32 2.0, %v2116
      %v2149 = vsub.f32 2.0, %v2117
      %v2150 = vsub.f32 2.0, %v2118
      %v2151 = vsub.f32 2.0, %v2119
      %v2152 = vsub.f32 2.0, %v2120
      %v2153 = vsub.f32 2.0, %v2121
      %v2154 = vsub.f32 2.0, %v2122
      %v2155 = vsub.f32 2.0, %v2123
      %v2156 = vsub.f32 2.0, %v2124
      %v2157 = vsub.f32 2.0, %v2125
      %v2158 = vsub.f32 2.0, %v2126
      %v2159 = vsub.f32 2.0, %v2127
      %v2160 = vsub.f32 2.0, %v2128
      %v2161 = vsub.f32 2.0, %v2129
      %v2162 = vsub.f32 2.0, %v2130
      %v2163 = vsub.f32 2.0, %v2131
      %v2164 = vmul.f32 %v2068, %v2132
      %v2165 = vmul.f32 %v2069, %v2133
      %v2166 = vmul.f32 %v2070, %v2134
      %v2167 = vmul.f32 %v2071, %v2135
      %v2168 = vmul.f32 %v2072, %v2136
      %v2169 = vmul.f32 %v2073, %v2137
      %v2170 = vmul.f32 %v2074, %v2138
      %v2171 = vmul.f32 %v2075, %v2139
      %v2172 = vmul.f32 %v2076, %v2140
      %v2173 = vmul.f32 %v2077, %v2141
      %v2174 = vmul.f32 %v2078, %v2142
      %v2175 = vmul.f32 %v2079, %v2143
      %v2176 = vmul.f32 %v2080, %v2144
      %v2177 = vmul.f32 %v2081, %v2145
      %v2178 = vmul.f32 %v2082, %v2146
      %v2179 = vmul.f32 %v2083, %v2147
      %v2180 = vmul.f32 %v2084, %v2148
      %v2181 = vmul.f32 %v2085, %v2149
      %v2182 = vmul.f32 %v2086, %v2150
      %v2183 = vmul.f32 %v2087, %v2151
      %v2184 = vmul.f32 %v2088, %v2152
      %v2185 = vmul.f32 %v2089, %v2153
      %v2186 = vmul.f32 %v2090, %v2154
      %v2187 = vmul.f32 %v2091, %v2155
      %v2188 = vmul.f32 %v2092, %v2156
      %v2189 = vmul.f32 %v2093, %v2157
      %v2190 = vmul.f32 %v2094, %v2158
      %v2191 = vmul.f32 %v2095, %v2159
      %v2192 = vmul.f32 %v2096, %v2160
      %v2193 = vmul.f32 %v2097, %v2161
      %v2194 = vmul.f32 %v2098, %v2162
      %v2195 = vmul.f32 %v2099, %v2163
      %v2196 = vmul.f32 %v2036, %v2164
      %v2197 = vmul.f32 %v2037, %v2165
      %v2198 = vmul.f32 %v2038, %v2166
      %v2199 = vmul.f32 %v2039, %v2167
      %v2200 = vmul.f32 %v2040, %v2168
      %v2201 = vmul.f32 %v2041, %v2169
      %v2202 = vmul.f32 %v2042, %v2170
      %v2203 = vmul.f32 %v2043, %v2171
      %v2204 = vmul.f32 %v2044, %v2172
      %v2205 = vmul.f32 %v2045, %v2173
      %v2206 = vmul.f32 %v2046, %v2174
      %v2207 = vmul.f32 %v2047, %v2175
      %v2208 = vmul.f32 %v2048, %v2176
      %v2209 = vmul.f32 %v2049, %v2177
      %v2210 = vmul.f32 %v2050, %v2178
      %v2211 = vmul.f32 %v2051, %v2179
      %v2212 = vmul.f32 %v2052, %v2180
      %v2213 = vmul.f32 %v2053, %v2181
      %v2214 = vmul.f32 %v2054, %v2182
      %v2215 = vmul.f32 %v2055, %v2183
      %v2216 = vmul.f32 %v2056, %v2184
      %v2217 = vmul.f32 %v2057, %v2185
      %v2218 = vmul.f32 %v2058, %v2186
      %v2219 = vmul.f32 %v2059, %v2187
      %v2220 = vmul.f32 %v2060, %v2188
      %v2221 = vmul.f32 %v2061, %v2189
      %v2222 = vmul.f32 %v2062, %v2190
      %v2223 = vmul.f32 %v2063, %v2191
      %v2224 = vmul.f32 %v2064, %v2192
      %v2225 = vmul.f32 %v2065, %v2193
      %v2226 = vmul.f32 %v2066, %v2194
      %v2227 = vmul.f32 %v2067, %v2195
      %v2228 = vsub.f32 2.0, %v2196
      %v2229 = vsub.f32 2.0, %v2197
      %v2230 = vsub.f32 2.0, %v2198
      %v2231 = vsub.f32 2.0, %v2199
      %v2232 = vsub.f32 2.0, %v2200
      %v2233 = vsub.f32 2.0, %v2201
      %v2234 = vsub.f32 2.0, %v2202
      %v2235 = vsub.f32 2.0, %v2203
      %v2236 = vsub.f32 2.0, %v2204
      %v2237 = vsub.f32 2.0, %v2205
      %v2238 = vsub.f32 2.0, %v2206
      %v2239 = vsub.f32 2.0, %v2207
      %v2240 = vsub.f32 2.0, %v2208
      %v2241 = vsub.f32 2.0, %v2209
      %v2242 = vsub.f32 2.0, %v2210
      %v2243 = vsub.f32 2.0, %v2211
      %v2244 = vsub.f32 2.0, %v2212
      %v2245 = vsub.f32 2.0, %v2213
      %v2246 = vsub.f32 2.0, %v2214
      %v2247 = vsub.f32 2.0, %v2215
      %v2248 = vsub.f32 2.0, %v2216
      %v2249 = vsub.f32 2.0, %v2217
      %v2250 = vsub.f32 2.0, %v2218
      %v2251 = vsub.f32 2.0, %v2219
      %v2252 = vsub.f32 2.0, %v2220
      %v2253 = vsub.f32 2.0, %v2221
      %v2254 = vsub.f32 2.0, %v2222
      %v2255 = vsub.f32 2.0, %v2223
      %v2256 = vsub.f32 2.0, %v2224
      %v2257 = vsub.f32 2.0, %v2225
      %v2258 = vsub.f32 2.0, %v2226
      %v2259 = vsub.f32 2.0, %v2227
      %v2260 = vmul.f32 %v2164, %v2228
      %v2261 = vmul.f32 %v2165, %v2229
      %v2262 = vmul.f32 %v2166, %v2230
      %v2263 = vmul.f32 %v2167, %v2231
      %v2264 = vmul.f32 %v2168, %v2232
      %v2265 = vmul.f32 %v2169, %v2233
      %v2266 = vmul.f32 %v2170, %v2234
      %v2267 = vmul.f32 %v2171, %v2235
      %v2268 = vmul.f32 %v2172, %v2236
      %v2269 = vmul.f32 %v2173, %v2237
      %v2270 = vmul.f32 %v2174, %v2238
      %v2271 = vmul.f32 %v2175, %v2239
      %v2272 = vmul.f32 %v2176, %v2240
      %v2273 = vmul.f32 %v2177, %v2241
      %v2274 = vmul.f32 %v2178, %v2242
      %v2275 = vmul.f32 %v2179, %v2243
      %v2276 = vmul.f32 %v2180, %v2244
      %v2277 = vmul.f32 %v2181, %v2245
      %v2278 = vmul.f32 %v2182, %v2246
      %v2279 = vmul.f32 %v2183, %v2247
      %v2280 = vmul.f32 %v2184, %v2248
      %v2281 = vmul.f32 %v2185, %v2249
      %v2282 = vmul.f32 %v2186, %v2250
      %v2283 = vmul.f32 %v2187, %v2251
      %v2284 = vmul.f32 %v2188, %v2252
      %v2285 = vmul.f32 %v2189, %v2253
      %v2286 = vmul.f32 %v2190, %v2254
      %v2287 = vmul.f32 %v2191, %v2255
      %v2288 = vmul.f32 %v2192, %v2256
      %v2289 = vmul.f32 %v2193, %v2257
      %v2290 = vmul.f32 %v2194, %v2258
      %v2291 = vmul.f32 %v2195, %v2259
      %v2292 = vlaneseq
      %v2293 = vshrl.u32 %v2292, 7
      %v2294 = vsub.s32 4, %v2293
      %v2295 = vrot.slane %v287, %v2294
      %v2296 = vmul.f32 %v2295, %v2260
      %v2297 = vmul.f32 %v2295, %v2261
      %v2298 = vmul.f32 %v2295, %v2262
      %v2299 = vmul.f32 %v2295, %v2263
      %v2300 = vmul.f32 %v2295, %v2264
      %v2301 = vmul.f32 %v2295, %v2265
      %v2302 = vmul.f32 %v2295, %v2266
      %v2303 = vmul.f32 %v2295, %v2267
      %v2304 = vmul.f32 %v2295, %v2268
      %v2305 = vmul.f32 %v2295, %v2269
      %v2306 = vmul.f32 %v2295, %v2270
      %v2307 = vmul.f32 %v2295, %v2271
      %v2308 = vmul.f32 %v2295, %v2272
      %v2309 = vmul.f32 %v2295, %v2273
      %v2310 = vmul.f32 %v2295, %v2274
      %v2311 = vmul.f32 %v2295, %v2275
      %v2312 = vmul.f32 %v2295, %v2276
      %v2313 = vmul.f32 %v2295, %v2277
      %v2314 = vmul.f32 %v2295, %v2278
      %v2315 = vmul.f32 %v2295, %v2279
      %v2316 = vmul.f32 %v2295, %v2280
      %v2317 = vmul.f32 %v2295, %v2281
      %v2318 = vmul.f32 %v2295, %v2282
      %v2319 = vmul.f32 %v2295, %v2283
      %v2320 = vmul.f32 %v2295, %v2284
      %v2321 = vmul.f32 %v2295, %v2285
      %v2322 = vmul.f32 %v2295, %v2286
      %v2323 = vmul.f32 %v2295, %v2287
      %v2324 = vmul.f32 %v2295, %v2288
      %v2325 = vmul.f32 %v2295, %v2289
      %v2326 = vmul.f32 %v2295, %v2290
      %v2327 = vmul.f32 %v2295, %v2291
      %v2328 = vsub.f32 %v1874, %v2296
      %v2329 = vsub.f32 %v1879, %v2297
      %v2330 = vsub.f32 %v1884, %v2298
      %v2331 = vsub.f32 %v1889, %v2299
      %v2332 = vsub.f32 %v1894, %v2300
      %v2333 = vsub.f32 %v1899, %v2301
      %v2334 = vsub.f32 %v1904, %v2302
      %v2335 = vsub.f32 %v1909, %v2303
      %v2336 = vsub.f32 %v1914, %v2304
      %v2337 = vsub.f32 %v1919, %v2305
      %v2338 = vsub.f32 %v1924, %v2306
      %v2339 = vsub.f32 %v1929, %v2307
      %v2340 = vsub.f32 %v1934, %v2308
      %v2341 = vsub.f32 %v1939, %v2309
      %v2342 = vsub.f32 %v1944, %v2310
      %v2343 = vsub.f32 %v1949, %v2311
      %v2344 = vsub.f32 %v1954, %v2312
      %v2345 = vsub.f32 %v1959, %v2313
      %v2346 = vsub.f32 %v1964, %v2314
      %v2347 = vsub.f32 %v1969, %v2315
      %v2348 = vsub.f32 %v1974, %v2316
      %v2349 = vsub.f32 %v1979, %v2317
      %v2350 = vsub.f32 %v1984, %v2318
      %v2351 = vsub.f32 %v1989, %v2319
      %v2352 = vsub.f32 %v1994, %v2320
      %v2353 = vsub.f32 %v1999, %v2321
      %v2354 = vsub.f32 %v2004, %v2322
      %v2355 = vsub.f32 %v2009, %v2323
      %v2356 = vsub.f32 %v2014, %v2324
      %v2357 = vsub.f32 %v2019, %v2325
      %v2358 = vsub.f32 %v2024, %v2326
      %v2359 = vsub.f32 %v2029, %v2327
      %2360 = vmax.xlane.f32.xlu0 %v2328
      %v2361 = vpop.xlane.xlu0 %2360
      %2362 = vmax.xlane.f32.xlu0 %v2329
      %v2363 = vpop.xlane.xlu0 %2362
      %2364 = vmax.xlane.f32.xlu0 %v2330
      %v2365 = vpop.xlane.xlu0 %2364
      %2366 = vmax.xlane.f32.xlu0 %v2331
      %v2367 = vpop.xlane.xlu0 %2366
      %2368 = vmax.xlane.f32.xlu0 %v2332
      %v2369 = vpop.xlane.xlu0 %2368
      %2370 = vmax.xlane.f32.xlu0 %v2333
      %v2371 = vpop.xlane.xlu0 %2370
      %2372 = vmax.xlane.f32.xlu0 %v2334
      %v2373 = vpop.xlane.xlu0 %2372
      %2374 = vmax.xlane.f32.xlu0 %v2335
      %v2375 = vpop.xlane.xlu0 %2374
      %2376 = vmax.xlane.f32.xlu0 %v2336
      %v2377 = vpop.xlane.xlu0 %2376
      %2378 = vmax.xlane.f32.xlu0 %v2337
      %v2379 = vpop.xlane.xlu0 %2378
      %2380 = vmax.xlane.f32.xlu0 %v2338
      %v2381 = vpop.xlane.xlu0 %2380
      %2382 = vmax.xlane.f32.xlu0 %v2339
      %v2383 = vpop.xlane.xlu0 %2382
      %2384 = vmax.xlane.f32.xlu0 %v2340
      %v2385 = vpop.xlane.xlu0 %2384
      %2386 = vmax.xlane.f32.xlu0 %v2341
      %v2387 = vpop.xlane.xlu0 %2386
      %2388 = vmax.xlane.f32.xlu0 %v2342
      %v2389 = vpop.xlane.xlu0 %2388
      %2390 = vmax.xlane.f32.xlu0 %v2343
      %v2391 = vpop.xlane.xlu0 %2390
      %2392 = vmax.xlane.f32.xlu0 %v2344
      %v2393 = vpop.xlane.xlu0 %2392
      %2394 = vmax.xlane.f32.xlu0 %v2345
      %v2395 = vpop.xlane.xlu0 %2394
      %2396 = vmax.xlane.f32.xlu0 %v2346
      %v2397 = vpop.xlane.xlu0 %2396
      %2398 = vmax.xlane.f32.xlu0 %v2347
      %v2399 = vpop.xlane.xlu0 %2398
      %2400 = vmax.xlane.f32.xlu0 %v2348
      %v2401 = vpop.xlane.xlu0 %2400
      %2402 = vmax.xlane.f32.xlu0 %v2349
      %v2403 = vpop.xlane.xlu0 %2402
      %2404 = vmax.xlane.f32.xlu0 %v2350
      %v2405 = vpop.xlane.xlu0 %2404
      %2406 = vmax.xlane.f32.xlu0 %v2351
      %v2407 = vpop.xlane.xlu0 %2406
      %2408 = vmax.xlane.f32.xlu0 %v2352
      %v2409 = vpop.xlane.xlu0 %2408
      %2410 = vmax.xlane.f32.xlu0 %v2353
      %v2411 = vpop.xlane.xlu0 %2410
      %2412 = vmax.xlane.f32.xlu0 %v2354
      %v2413 = vpop.xlane.xlu0 %2412
      %2414 = vmax.xlane.f32.xlu0 %v2355
      %v2415 = vpop.xlane.xlu0 %2414
      %2416 = vmax.xlane.f32.xlu0 %v2356
      %v2417 = vpop.xlane.xlu0 %2416
      %2418 = vmax.xlane.f32.xlu0 %v2357
      %v2419 = vpop.xlane.xlu0 %2418
      %2420 = vmax.xlane.f32.xlu0 %v2358
      %v2421 = vpop.xlane.xlu0 %2420
      %2422 = vmax.xlane.f32.xlu0 %v2359
      %v2423 = vpop.xlane.xlu0 %2422
      %v2424 = vsub.f32 %v2328, %v2361
      %v2425 = vsub.f32 %v2329, %v2363
      %v2426 = vsub.f32 %v2330, %v2365
      %v2427 = vsub.f32 %v2331, %v2367
      %v2428 = vsub.f32 %v2332, %v2369
      %v2429 = vsub.f32 %v2333, %v2371
      %v2430 = vsub.f32 %v2334, %v2373
      %v2431 = vsub.f32 %v2335, %v2375
      %v2432 = vsub.f32 %v2336, %v2377
      %v2433 = vsub.f32 %v2337, %v2379
      %v2434 = vsub.f32 %v2338, %v2381
      %v2435 = vsub.f32 %v2339, %v2383
      %v2436 = vsub.f32 %v2340, %v2385
      %v2437 = vsub.f32 %v2341, %v2387
      %v2438 = vsub.f32 %v2342, %v2389
      %v2439 = vsub.f32 %v2343, %v2391
      %v2440 = vsub.f32 %v2344, %v2393
      %v2441 = vsub.f32 %v2345, %v2395
      %v2442 = vsub.f32 %v2346, %v2397
      %v2443 = vsub.f32 %v2347, %v2399
      %v2444 = vsub.f32 %v2348, %v2401
      %v2445 = vsub.f32 %v2349, %v2403
      %v2446 = vsub.f32 %v2350, %v2405
      %v2447 = vsub.f32 %v2351, %v2407
      %v2448 = vsub.f32 %v2352, %v2409
      %v2449 = vsub.f32 %v2353, %v2411
      %v2450 = vsub.f32 %v2354, %v2413
      %v2451 = vsub.f32 %v2355, %v2415
      %v2452 = vsub.f32 %v2356, %v2417
      %v2453 = vsub.f32 %v2357, %v2419
      %v2454 = vsub.f32 %v2358, %v2421
      %v2455 = vsub.f32 %v2359, %v2423
      %v2456 = vmul.f32 %v2424, 1.442695
      %v2457 = vpow.pop %v2456
      %v2458 = vmul.f32 %v2425, 1.442695
      %v2459 = vpow.pop %v2458
      %v2460 = vmul.f32 %v2426, 1.442695
      %v2461 = vpow.pop %v2460
      %v2462 = vmul.f32 %v2427, 1.442695
      %v2463 = vpow.pop %v2462
      %v2464 = vmul.f32 %v2428, 1.442695
      %v2465 = vpow.pop %v2464
      %v2466 = vmul.f32 %v2429, 1.442695
      %v2467 = vpow.pop %v2466
      %v2468 = vmul.f32 %v2430, 1.442695
      %v2469 = vpow.pop %v2468
      %v2470 = vmul.f32 %v2431, 1.442695
      %v2471 = vpow.pop %v2470
      %v2472 = vmul.f32 %v2432, 1.442695
      %v2473 = vpow.pop %v2472
      %v2474 = vmul.f32 %v2433, 1.442695
      %v2475 = vpow.pop %v2474
      %v2476 = vmul.f32 %v2434, 1.442695
      %v2477 = vpow.pop %v2476
      %v2478 = vmul.f32 %v2435, 1.442695
      %v2479 = vpow.pop %v2478
      %v2480 = vmul.f32 %v2436, 1.442695
      %v2481 = vpow.pop %v2480
      %v2482 = vmul.f32 %v2437, 1.442695
      %v2483 = vpow.pop %v2482
      %v2484 = vmul.f32 %v2438, 1.442695
      %v2485 = vpow.pop %v2484
      %v2486 = vmul.f32 %v2439, 1.442695
      %v2487 = vpow.pop %v2486
      %v2488 = vmul.f32 %v2440, 1.442695
      %v2489 = vpow.pop %v2488
      %v2490 = vmul.f32 %v2441, 1.442695
      %v2491 = vpow.pop %v2490
      %v2492 = vmul.f32 %v2442, 1.442695
      %v2493 = vpow.pop %v2492
      %v2494 = vmul.f32 %v2443, 1.442695
      %v2495 = vpow.pop %v2494
      %v2496 = vmul.f32 %v2444, 1.442695
      %v2497 = vpow.pop %v2496
      %v2498 = vmul.f32 %v2445, 1.442695
      %v2499 = vpow.pop %v2498
      %v2500 = vmul.f32 %v2446, 1.442695
      %v2501 = vpow.pop %v2500
      %v2502 = vmul.f32 %v2447, 1.442695
      %v2503 = vpow.pop %v2502
      %v2504 = vmul.f32 %v2448, 1.442695
      %v2505 = vpow.pop %v2504
      %v2506 = vmul.f32 %v2449, 1.442695
      %v2507 = vpow.pop %v2506
      %v2508 = vmul.f32 %v2450, 1.442695
      %v2509 = vpow.pop %v2508
      %v2510 = vmul.f32 %v2451, 1.442695
      %v2511 = vpow.pop %v2510
      %v2512 = vmul.f32 %v2452, 1.442695
      %v2513 = vpow.pop %v2512
      %v2514 = vmul.f32 %v2453, 1.442695
      %v2515 = vpow.pop %v2514
      %v2516 = vmul.f32 %v2454, 1.442695
      %v2517 = vpow.pop %v2516
      %v2518 = vmul.f32 %v2455, 1.442695
      %v2519 = vpow.pop %v2518
      %2520 = vadd.xlane.f32.xlu0 %v2457
      %v2521 = vpop.xlane.xlu0 %2520
      %2522 = vadd.xlane.f32.xlu0 %v2459
      %v2523 = vpop.xlane.xlu0 %2522
      %2524 = vadd.xlane.f32.xlu0 %v2461
      %v2525 = vpop.xlane.xlu0 %2524
      %2526 = vadd.xlane.f32.xlu0 %v2463
      %v2527 = vpop.xlane.xlu0 %2526
      %2528 = vadd.xlane.f32.xlu0 %v2465
      %v2529 = vpop.xlane.xlu0 %2528
      %2530 = vadd.xlane.f32.xlu0 %v2467
      %v2531 = vpop.xlane.xlu0 %2530
      %2532 = vadd.xlane.f32.xlu0 %v2469
      %v2533 = vpop.xlane.xlu0 %2532
      %2534 = vadd.xlane.f32.xlu0 %v2471
      %v2535 = vpop.xlane.xlu0 %2534
      %2536 = vadd.xlane.f32.xlu0 %v2473
      %v2537 = vpop.xlane.xlu0 %2536
      %2538 = vadd.xlane.f32.xlu0 %v2475
      %v2539 = vpop.xlane.xlu0 %2538
      %2540 = vadd.xlane.f32.xlu0 %v2477
      %v2541 = vpop.xlane.xlu0 %2540
      %2542 = vadd.xlane.f32.xlu0 %v2479
      %v2543 = vpop.xlane.xlu0 %2542
      %2544 = vadd.xlane.f32.xlu0 %v2481
      %v2545 = vpop.xlane.xlu0 %2544
      %2546 = vadd.xlane.f32.xlu0 %v2483
      %v2547 = vpop.xlane.xlu0 %2546
      %2548 = vadd.xlane.f32.xlu0 %v2485
      %v2549 = vpop.xlane.xlu0 %2548
      %2550 = vadd.xlane.f32.xlu0 %v2487
      %v2551 = vpop.xlane.xlu0 %2550
      %2552 = vadd.xlane.f32.xlu0 %v2489
      %v2553 = vpop.xlane.xlu0 %2552
      %2554 = vadd.xlane.f32.xlu0 %v2491
      %v2555 = vpop.xlane.xlu0 %2554
      %2556 = vadd.xlane.f32.xlu0 %v2493
      %v2557 = vpop.xlane.xlu0 %2556
      %2558 = vadd.xlane.f32.xlu0 %v2495
      %v2559 = vpop.xlane.xlu0 %2558
      %2560 = vadd.xlane.f32.xlu0 %v2497
      %v2561 = vpop.xlane.xlu0 %2560
      %2562 = vadd.xlane.f32.xlu0 %v2499
      %v2563 = vpop.xlane.xlu0 %2562
      %2564 = vadd.xlane.f32.xlu0 %v2501
      %v2565 = vpop.xlane.xlu0 %2564
      %2566 = vadd.xlane.f32.xlu0 %v2503
      %v2567 = vpop.xlane.xlu0 %2566
      %2568 = vadd.xlane.f32.xlu0 %v2505
      %v2569 = vpop.xlane.xlu0 %2568
      %2570 = vadd.xlane.f32.xlu0 %v2507
      %v2571 = vpop.xlane.xlu0 %2570
      %2572 = vadd.xlane.f32.xlu0 %v2509
      %v2573 = vpop.xlane.xlu0 %2572
      %2574 = vadd.xlane.f32.xlu0 %v2511
      %v2575 = vpop.xlane.xlu0 %2574
      %2576 = vadd.xlane.f32.xlu0 %v2513
      %v2577 = vpop.xlane.xlu0 %2576
      %2578 = vadd.xlane.f32.xlu0 %v2515
      %v2579 = vpop.xlane.xlu0 %2578
      %2580 = vadd.xlane.f32.xlu0 %v2517
      %v2581 = vpop.xlane.xlu0 %2580
      %2582 = vadd.xlane.f32.xlu0 %v2519
      %v2583 = vpop.xlane.xlu0 %2582
      %v2584 = vrcp.pop %v2521
      %v2585 = vrcp.pop %v2523
      %v2586 = vrcp.pop %v2525
      %v2587 = vrcp.pop %v2527
      %v2588 = vrcp.pop %v2529
      %v2589 = vrcp.pop %v2531
      %v2590 = vrcp.pop %v2533
      %v2591 = vrcp.pop %v2535
      %v2592 = vrcp.pop %v2537
      %v2593 = vrcp.pop %v2539
      %v2594 = vrcp.pop %v2541
      %v2595 = vrcp.pop %v2543
      %v2596 = vrcp.pop %v2545
      %v2597 = vrcp.pop %v2547
      %v2598 = vrcp.pop %v2549
      %v2599 = vrcp.pop %v2551
      %v2600 = vrcp.pop %v2553
      %v2601 = vrcp.pop %v2555
      %v2602 = vrcp.pop %v2557
      %v2603 = vrcp.pop %v2559
      %v2604 = vrcp.pop %v2561
      %v2605 = vrcp.pop %v2563
      %v2606 = vrcp.pop %v2565
      %v2607 = vrcp.pop %v2567
      %v2608 = vrcp.pop %v2569
      %v2609 = vrcp.pop %v2571
      %v2610 = vrcp.pop %v2573
      %v2611 = vrcp.pop %v2575
      %v2612 = vrcp.pop %v2577
      %v2613 = vrcp.pop %v2579
      %v2614 = vrcp.pop %v2581
      %v2615 = vrcp.pop %v2583
      %v2616 = vmul.f32 %v2521, %v2584
      %v2617 = vmul.f32 %v2523, %v2585
      %v2618 = vmul.f32 %v2525, %v2586
      %v2619 = vmul.f32 %v2527, %v2587
      %v2620 = vmul.f32 %v2529, %v2588
      %v2621 = vmul.f32 %v2531, %v2589
      %v2622 = vmul.f32 %v2533, %v2590
      %v2623 = vmul.f32 %v2535, %v2591
      %v2624 = vmul.f32 %v2537, %v2592
      %v2625 = vmul.f32 %v2539, %v2593
      %v2626 = vmul.f32 %v2541, %v2594
      %v2627 = vmul.f32 %v2543, %v2595
      %v2628 = vmul.f32 %v2545, %v2596
      %v2629 = vmul.f32 %v2547, %v2597
      %v2630 = vmul.f32 %v2549, %v2598
      %v2631 = vmul.f32 %v2551, %v2599
      %v2632 = vmul.f32 %v2553, %v2600
      %v2633 = vmul.f32 %v2555, %v2601
      %v2634 = vmul.f32 %v2557, %v2602
      %v2635 = vmul.f32 %v2559, %v2603
      %v2636 = vmul.f32 %v2561, %v2604
      %v2637 = vmul.f32 %v2563, %v2605
      %v2638 = vmul.f32 %v2565, %v2606
      %v2639 = vmul.f32 %v2567, %v2607
      %v2640 = vmul.f32 %v2569, %v2608
      %v2641 = vmul.f32 %v2571, %v2609
      %v2642 = vmul.f32 %v2573, %v2610
      %v2643 = vmul.f32 %v2575, %v2611
      %v2644 = vmul.f32 %v2577, %v2612
      %v2645 = vmul.f32 %v2579, %v2613
      %v2646 = vmul.f32 %v2581, %v2614
      %v2647 = vmul.f32 %v2583, %v2615
      %v2648 = vsub.f32 2.0, %v2616
      %v2649 = vsub.f32 2.0, %v2617
      %v2650 = vsub.f32 2.0, %v2618
      %v2651 = vsub.f32 2.0, %v2619
      %v2652 = vsub.f32 2.0, %v2620
      %v2653 = vsub.f32 2.0, %v2621
      %v2654 = vsub.f32 2.0, %v2622
      %v2655 = vsub.f32 2.0, %v2623
      %v2656 = vsub.f32 2.0, %v2624
      %v2657 = vsub.f32 2.0, %v2625
      %v2658 = vsub.f32 2.0, %v2626
      %v2659 = vsub.f32 2.0, %v2627
      %v2660 = vsub.f32 2.0, %v2628
      %v2661 = vsub.f32 2.0, %v2629
      %v2662 = vsub.f32 2.0, %v2630
      %v2663 = vsub.f32 2.0, %v2631
      %v2664 = vsub.f32 2.0, %v2632
      %v2665 = vsub.f32 2.0, %v2633
      %v2666 = vsub.f32 2.0, %v2634
      %v2667 = vsub.f32 2.0, %v2635
      %v2668 = vsub.f32 2.0, %v2636
      %v2669 = vsub.f32 2.0, %v2637
      %v2670 = vsub.f32 2.0, %v2638
      %v2671 = vsub.f32 2.0, %v2639
      %v2672 = vsub.f32 2.0, %v2640
      %v2673 = vsub.f32 2.0, %v2641
      %v2674 = vsub.f32 2.0, %v2642
      %v2675 = vsub.f32 2.0, %v2643
      %v2676 = vsub.f32 2.0, %v2644
      %v2677 = vsub.f32 2.0, %v2645
      %v2678 = vsub.f32 2.0, %v2646
      %v2679 = vsub.f32 2.0, %v2647
      %v2680 = vmul.f32 %v2584, %v2648
      %v2681 = vmul.f32 %v2585, %v2649
      %v2682 = vmul.f32 %v2586, %v2650
      %v2683 = vmul.f32 %v2587, %v2651
      %v2684 = vmul.f32 %v2588, %v2652
      %v2685 = vmul.f32 %v2589, %v2653
      %v2686 = vmul.f32 %v2590, %v2654
      %v2687 = vmul.f32 %v2591, %v2655
      %v2688 = vmul.f32 %v2592, %v2656
      %v2689 = vmul.f32 %v2593, %v2657
      %v2690 = vmul.f32 %v2594, %v2658
      %v2691 = vmul.f32 %v2595, %v2659
      %v2692 = vmul.f32 %v2596, %v2660
      %v2693 = vmul.f32 %v2597, %v2661
      %v2694 = vmul.f32 %v2598, %v2662
      %v2695 = vmul.f32 %v2599, %v2663
      %v2696 = vmul.f32 %v2600, %v2664
      %v2697 = vmul.f32 %v2601, %v2665
      %v2698 = vmul.f32 %v2602, %v2666
      %v2699 = vmul.f32 %v2603, %v2667
      %v2700 = vmul.f32 %v2604, %v2668
      %v2701 = vmul.f32 %v2605, %v2669
      %v2702 = vmul.f32 %v2606, %v2670
      %v2703 = vmul.f32 %v2607, %v2671
      %v2704 = vmul.f32 %v2608, %v2672
      %v2705 = vmul.f32 %v2609, %v2673
      %v2706 = vmul.f32 %v2610, %v2674
      %v2707 = vmul.f32 %v2611, %v2675
      %v2708 = vmul.f32 %v2612, %v2676
      %v2709 = vmul.f32 %v2613, %v2677
      %v2710 = vmul.f32 %v2614, %v2678
      %v2711 = vmul.f32 %v2615, %v2679
      %v2712 = vmul.f32 %v2521, %v2680
      %v2713 = vmul.f32 %v2523, %v2681
      %v2714 = vmul.f32 %v2525, %v2682
      %v2715 = vmul.f32 %v2527, %v2683
      %v2716 = vmul.f32 %v2529, %v2684
      %v2717 = vmul.f32 %v2531, %v2685
      %v2718 = vmul.f32 %v2533, %v2686
      %v2719 = vmul.f32 %v2535, %v2687
      %v2720 = vmul.f32 %v2537, %v2688
      %v2721 = vmul.f32 %v2539, %v2689
      %v2722 = vmul.f32 %v2541, %v2690
      %v2723 = vmul.f32 %v2543, %v2691
      %v2724 = vmul.f32 %v2545, %v2692
      %v2725 = vmul.f32 %v2547, %v2693
      %v2726 = vmul.f32 %v2549, %v2694
      %v2727 = vmul.f32 %v2551, %v2695
      %v2728 = vmul.f32 %v2553, %v2696
      %v2729 = vmul.f32 %v2555, %v2697
      %v2730 = vmul.f32 %v2557, %v2698
      %v2731 = vmul.f32 %v2559, %v2699
      %v2732 = vmul.f32 %v2561, %v2700
      %v2733 = vmul.f32 %v2563, %v2701
      %v2734 = vmul.f32 %v2565, %v2702
      %v2735 = vmul.f32 %v2567, %v2703
      %v2736 = vmul.f32 %v2569, %v2704
      %v2737 = vmul.f32 %v2571, %v2705
      %v2738 = vmul.f32 %v2573, %v2706
      %v2739 = vmul.f32 %v2575, %v2707
      %v2740 = vmul.f32 %v2577, %v2708
      %v2741 = vmul.f32 %v2579, %v2709
      %v2742 = vmul.f32 %v2581, %v2710
      %v2743 = vmul.f32 %v2583, %v2711
      %v2744 = vsub.f32 2.0, %v2712
      %v2745 = vsub.f32 2.0, %v2713
      %v2746 = vsub.f32 2.0, %v2714
      %v2747 = vsub.f32 2.0, %v2715
      %v2748 = vsub.f32 2.0, %v2716
      %v2749 = vsub.f32 2.0, %v2717
      %v2750 = vsub.f32 2.0, %v2718
      %v2751 = vsub.f32 2.0, %v2719
      %v2752 = vsub.f32 2.0, %v2720
      %v2753 = vsub.f32 2.0, %v2721
      %v2754 = vsub.f32 2.0, %v2722
      %v2755 = vsub.f32 2.0, %v2723
      %v2756 = vsub.f32 2.0, %v2724
      %v2757 = vsub.f32 2.0, %v2725
      %v2758 = vsub.f32 2.0, %v2726
      %v2759 = vsub.f32 2.0, %v2727
      %v2760 = vsub.f32 2.0, %v2728
      %v2761 = vsub.f32 2.0, %v2729
      %v2762 = vsub.f32 2.0, %v2730
      %v2763 = vsub.f32 2.0, %v2731
      %v2764 = vsub.f32 2.0, %v2732
      %v2765 = vsub.f32 2.0, %v2733
      %v2766 = vsub.f32 2.0, %v2734
      %v2767 = vsub.f32 2.0, %v2735
      %v2768 = vsub.f32 2.0, %v2736
      %v2769 = vsub.f32 2.0, %v2737
      %v2770 = vsub.f32 2.0, %v2738
      %v2771 = vsub.f32 2.0, %v2739
      %v2772 = vsub.f32 2.0, %v2740
      %v2773 = vsub.f32 2.0, %v2741
      %v2774 = vsub.f32 2.0, %v2742
      %v2775 = vsub.f32 2.0, %v2743
      %v2776 = vmul.f32 %v2680, %v2744
      %v2777 = vmul.f32 %v2681, %v2745
      %v2778 = vmul.f32 %v2682, %v2746
      %v2779 = vmul.f32 %v2683, %v2747
      %v2780 = vmul.f32 %v2684, %v2748
      %v2781 = vmul.f32 %v2685, %v2749
      %v2782 = vmul.f32 %v2686, %v2750
      %v2783 = vmul.f32 %v2687, %v2751
      %v2784 = vmul.f32 %v2688, %v2752
      %v2785 = vmul.f32 %v2689, %v2753
      %v2786 = vmul.f32 %v2690, %v2754
      %v2787 = vmul.f32 %v2691, %v2755
      %v2788 = vmul.f32 %v2692, %v2756
      %v2789 = vmul.f32 %v2693, %v2757
      %v2790 = vmul.f32 %v2694, %v2758
      %v2791 = vmul.f32 %v2695, %v2759
      %v2792 = vmul.f32 %v2696, %v2760
      %v2793 = vmul.f32 %v2697, %v2761
      %v2794 = vmul.f32 %v2698, %v2762
      %v2795 = vmul.f32 %v2699, %v2763
      %v2796 = vmul.f32 %v2700, %v2764
      %v2797 = vmul.f32 %v2701, %v2765
      %v2798 = vmul.f32 %v2702, %v2766
      %v2799 = vmul.f32 %v2703, %v2767
      %v2800 = vmul.f32 %v2704, %v2768
      %v2801 = vmul.f32 %v2705, %v2769
      %v2802 = vmul.f32 %v2706, %v2770
      %v2803 = vmul.f32 %v2707, %v2771
      %v2804 = vmul.f32 %v2708, %v2772
      %v2805 = vmul.f32 %v2709, %v2773
      %v2806 = vmul.f32 %v2710, %v2774
      %v2807 = vmul.f32 %v2711, %v2775
      %v2808 = vmul.f32 %v2457, %v2776
      %v2809 = vmul.f32 %v2459, %v2777
      %v2810 = vmul.f32 %v2461, %v2778
      %v2811 = vmul.f32 %v2463, %v2779
      %v2812 = vmul.f32 %v2465, %v2780
      %v2813 = vmul.f32 %v2467, %v2781
      %v2814 = vmul.f32 %v2469, %v2782
      %v2815 = vmul.f32 %v2471, %v2783
      %v2816 = vmul.f32 %v2473, %v2784
      %v2817 = vmul.f32 %v2475, %v2785
      %v2818 = vmul.f32 %v2477, %v2786
      %v2819 = vmul.f32 %v2479, %v2787
      %v2820 = vmul.f32 %v2481, %v2788
      %v2821 = vmul.f32 %v2483, %v2789
      %v2822 = vmul.f32 %v2485, %v2790
      %v2823 = vmul.f32 %v2487, %v2791
      %v2824 = vmul.f32 %v2489, %v2792
      %v2825 = vmul.f32 %v2491, %v2793
      %v2826 = vmul.f32 %v2493, %v2794
      %v2827 = vmul.f32 %v2495, %v2795
      %v2828 = vmul.f32 %v2497, %v2796
      %v2829 = vmul.f32 %v2499, %v2797
      %v2830 = vmul.f32 %v2501, %v2798
      %v2831 = vmul.f32 %v2503, %v2799
      %v2832 = vmul.f32 %v2505, %v2800
      %v2833 = vmul.f32 %v2507, %v2801
      %v2834 = vmul.f32 %v2509, %v2802
      %v2835 = vmul.f32 %v2511, %v2803
      %v2836 = vmul.f32 %v2513, %v2804
      %v2837 = vmul.f32 %v2515, %v2805
      %v2838 = vmul.f32 %v2517, %v2806
      %v2839 = vmul.f32 %v2519, %v2807
      %vm2840 = vcmask 31744
      %2841 = vst.msk [vmem:[%s253] sm:$0xff] %vm2840, %v2808
      %2842 = vst.msk [vmem:[%s253 + $0x8] sm:$0xff] %vm2840, %v2809
      %2843 = vst.msk [vmem:[%s253 + $0x10] sm:$0xff] %vm2840, %v2810
      %2844 = vst.msk [vmem:[%s253 + $0x18] sm:$0xff] %vm2840, %v2811
      %2845 = vst.msk [vmem:[%s253 + $0x20] sm:$0xff] %vm2840, %v2812
      %2846 = vst.msk [vmem:[%s253 + $0x28] sm:$0xff] %vm2840, %v2813
      %2847 = vst.msk [vmem:[%s253 + $0x30] sm:$0xff] %vm2840, %v2814
      %2848 = vst.msk [vmem:[%s253 + $0x38] sm:$0xff] %vm2840, %v2815
      %2849 = vst.msk [vmem:[%s253 + $0x40] sm:$0xff] %vm2840, %v2816
      %2850 = vst.msk [vmem:[%s253 + $0x48] sm:$0xff] %vm2840, %v2817
      %2851 = vst.msk [vmem:[%s253 + $0x50] sm:$0xff] %vm2840, %v2818
      %2852 = vst.msk [vmem:[%s253 + $0x58] sm:$0xff] %vm2840, %v2819
      %2853 = vst.msk [vmem:[%s253 + $0x60] sm:$0xff] %vm2840, %v2820
      %2854 = vst.msk [vmem:[%s253 + $0x68] sm:$0xff] %vm2840, %v2821
      %2855 = vst.msk [vmem:[%s253 + $0x70] sm:$0xff] %vm2840, %v2822
      %2856 = vst.msk [vmem:[%s253 + $0x78] sm:$0xff] %vm2840, %v2823
      %2857 = vst.msk [vmem:[%s253 + $0x80] sm:$0xff] %vm2840, %v2824
      %2858 = vst.msk [vmem:[%s253 + $0x88] sm:$0xff] %vm2840, %v2825
      %2859 = vst.msk [vmem:[%s253 + $0x90] sm:$0xff] %vm2840, %v2826
      %2860 = vst.msk [vmem:[%s253 + $0x98] sm:$0xff] %vm2840, %v2827
      %2861 = vst.msk [vmem:[%s253 + $0xa0] sm:$0xff] %vm2840, %v2828
      %2862 = vst.msk [vmem:[%s253 + $0xa8] sm:$0xff] %vm2840, %v2829
      %2863 = vst.msk [vmem:[%s253 + $0xb0] sm:$0xff] %vm2840, %v2830
      %2864 = vst.msk [vmem:[%s253 + $0xb8] sm:$0xff] %vm2840, %v2831
      %2865 = vst.msk [vmem:[%s253 + $0xc0] sm:$0xff] %vm2840, %v2832
      %2866 = vst.msk [vmem:[%s253 + $0xc8] sm:$0xff] %vm2840, %v2833
      %2867 = vst.msk [vmem:[%s253 + $0xd0] sm:$0xff] %vm2840, %v2834
      %2868 = vst.msk [vmem:[%s253 + $0xd8] sm:$0xff] %vm2840, %v2835
      %2869 = vst.msk [vmem:[%s253 + $0xe0] sm:$0xff] %vm2840, %v2836
      %2870 = vst.msk [vmem:[%s253 + $0xe8] sm:$0xff] %vm2840, %v2837
      %2871 = vst.msk [vmem:[%s253 + $0xf0] sm:$0xff] %vm2840, %v2838
      %2872 = vst.msk [vmem:[%s253 + $0xf8] sm:$0xff] %vm2840, %v2839
      %s2873 = smul.u32 32, %s17
      %p2874 = scmp.lt.s32.totalorder %s2873, 63
      %s2875 = scalar_select %p2874, %s2873, 63
      %s2876 = smul.addr %s2875, 8
      %s2877 = scalar_lea.vmem %s6, %s2876
      // Predicated region
      $region45: #{tpu_custom_call.1} parent=43 // pred_check
        %p2878 = pneg %p166
      $region46: #{tpu_custom_call.1} parent=43 // pred_check_branch
        %2880 = sbr.rel (%p2878) target = $region48
      $region47: #{tpu_custom_call.1} parent=43 // pred_region
        %s2881 = smul.u32 32, %s17
      $region48: #{tpu_custom_call.1} parent=43 // pred_fallthru
        _
    $region44: #{tpu_custom_call.1} parent=5 // pred_fallthru
      _
    %p2882 = scmp.le.s32.totalorder 2, %s12
    // Predicated region
    $region49: #{tpu_custom_call.1} parent=5 // pred_check
      %p2883 = pneg %p2882
    $region50: #{tpu_custom_call.1} parent=5 // pred_check_branch
      %2885 = sbr.rel (%p2883) target = $region52
    $region51: #{tpu_custom_call.1} parent=5 // pred_region
      %s2886 = ssub.s32 %s12, 2
      // Predicated region
      $region53: #{tpu_custom_call.1} parent=51 // pred_check
        %p2887 = pneg %p172
      $region54: #{tpu_custom_call.1} parent=51 // pred_check_branch
        %2889 = sbr.rel (%p2887) target = $region56
      $region55: #{tpu_custom_call.1} parent=51 // pred_region
        %s2890 = smul.u32 32, %s18
        %p2891 = scmp.lt.s32.totalorder %s2890, 63
        %s2892 = scalar_select %p2891, %s2890, 63
        %s2893 = smul.addr %s2892, 8
        %s2894 = scalar_lea.vmem %s6, %s2893
      $region56: #{tpu_custom_call.1} parent=51 // pred_fallthru
        _
    $region52: #{tpu_custom_call.1} parent=5 // pred_fallthru
      _
  $region6: #{tpu_custom_call.1} parent=0 // loop_footer
    %s16 = sadd.s32 1, %s12
  $region7: #{tpu_custom_call.1} parent=0 // loop_footer_branch
    %11 = sbr.rel target = $region3
  $region8: #{tpu_custom_call.1} parent=0 // loop_exit
    _

</llo_original>
